<compile_context>
chip_gen: v6e
topology: v6e:2x2x1
jax: 0.10.0
libtpu: 0.0.40
codegen_flags: <defaults>
</compile_context>

<pallas_src>
import functools

import jax
import jax.numpy as jnp
from jax.experimental import pallas as pl
from jax.experimental.pallas import tpu as pltpu


# --------------------------------------------------------------------------- #
# Kernel 1: combined QKV projection -> head-major (B, H, T, head_dim) Q/K/V.  #
# --------------------------------------------------------------------------- #
def _qkv_proj_kernel(x_ref, wqkv_ref, q_ref, k_ref, v_ref,
                     *, num_heads: int, head_dim: int, d_out: int):
    # x_ref:     (1, TP, d_in)          bf16
    # wqkv_ref:  (d_in, 3*d_out)        bf16 (Q columns pre-scaled by sqrt(head_dim))
    # q/k/v_ref: (1, H, TP, head_dim)   bf16
    qkv = jnp.dot(x_ref[0], wqkv_ref[...],
                  preferred_element_type=jnp.float32)           # (TP, 3*d_out) f32
    qkv = qkv.astype(q_ref.dtype)
    for h in range(num_heads):                                  # static, small
        off = h * head_dim
        q_ref[0, h] = qkv[:, off:off + head_dim]
        k_ref[0, h] = qkv[:, d_out + off:d_out + off + head_dim]
        v_ref[0, h] = qkv[:, 2 * d_out + off:2 * d_out + off + head_dim]


# --------------------------------------------------------------------------- #
# Kernel 2: causal flash attention (batched heads) + fused output projection. #
# --------------------------------------------------------------------------- #
def _attn_kernel(q_ref, k_ref, v_ref, wproj_ref, bproj_ref, o_ref,
                 acc_scr, m_scr, l_scr,
                 *, num_heads: int, tq: int):
    # q_ref:      (1, H, TQ, hd) bf16 (already scaled by sqrt(hd))
    # k_ref/v_ref:(1, H, T,  hd) bf16 (full sequence; block constant over the qi axis)
    # wproj_ref:  (H, hd, d_out) bf16
    # bproj_ref:  (1, d_out)     f32
    # o_ref:      (1, TQ, d_out) input dtype
    # acc_scr:    (H, TQ, hd) f32 ; m_scr / l_scr: (H, TQ, 1) f32
    qi = pl.program_id(1)

    m_scr[...] = jnp.full_like(m_scr, -jnp.inf)
    l_scr[...] = jnp.zeros_like(l_scr)
    acc_scr[...] = jnp.zeros_like(acc_scr)

    def kv_block(j, mask_diagonal):
        start = pl.multiple_of(j * tq, tq)
        q = q_ref[0]                                            # (H, TQ, hd)
        k_j = k_ref[0, :, pl.ds(start, tq), :]                  # (H, TQ, hd)
        v_j = v_ref[0, :, pl.ds(start, tq), :]                  # (H, TQ, hd)

        # Batched-over-heads scores on the MXU, f32 accumulation.
        s = jnp.einsum('hqd,hkd->hqk', q, k_j,
                       preferred_element_type=jnp.float32)      # (H, TQ, TQ)
        if mask_diagonal:
            # Diagonal KV block: global key > global query  <=>  in-block key > in-block query.
            q_ids = jax.lax.broadcasted_iota(jnp.int32, (tq, tq), 0)
            k_ids = jax.lax.broadcasted_iota(jnp.int32, (tq, tq), 1)
            s = jnp.where((k_ids > q_ids)[None], -jnp.inf, s)

        # Online softmax update (f32 statistics).
        m_prev = m_scr[...]
        m_new = jnp.maximum(m_prev, jnp.max(s, axis=-1, keepdims=True))
        alpha = jnp.exp(m_prev - m_new)
        p = jnp.exp(s - m_new)
        l_scr[...] = alpha * l_scr[...] + jnp.sum(p, axis=-1, keepdims=True)
        acc_scr[...] = alpha * acc_scr[...] + jnp.einsum(
            'hqk,hkd->hqd', p.astype(v_j.dtype), v_j,
            preferred_element_type=jnp.float32)
        m_scr[...] = m_new

    # Fully-visible KV blocks strictly below the diagonal: j in [0, qi) — no mask work.
    def body(j, carry):
        kv_block(j, mask_diagonal=False)
        return carry
    jax.lax.fori_loop(0, qi, body, 0)
    # Diagonal block (j == qi) with the causal mask; blocks j > qi are never touched.
    kv_block(qi, mask_diagonal=True)

    ctx = (acc_scr[...] * pl.reciprocal(l_scr[...], approx=True)
           ).astype(jnp.bfloat16)                               # (H, TQ, hd)

    # Fused output projection: accumulate per-head contributions into one f32
    # (TQ, d_out) value, then a single lane-dense store (+ bias).
    out = jnp.dot(ctx[0], wproj_ref[0], preferred_element_type=jnp.float32)
    for h in range(1, num_heads):
        out = out + jnp.dot(ctx[h], wproj_ref[h],
                            preferred_element_type=jnp.float32)
    o_ref[0] = (out + bproj_ref[...]).astype(o_ref.dtype)


# --------------------------------------------------------------------------- #
# Wrapper                                                                     #
# --------------------------------------------------------------------------- #
def mha_combined_qkv(x, w_qkv_t, w_proj_t, b_proj, *, num_heads, tq=None):
    """Forward of MultiHeadAttentionCombinedQKV (qkv_bias=False, dropout=0.0).

    x:        (B, T, d_in)
    w_qkv_t:  (d_in, 3*d_out)  == qkv.weight.T
    w_proj_t: (d_out, d_out)   == proj.weight.T
    b_proj:   (d_out,)         == proj.bias
    """
    B, T, d_in = x.shape
    d_out = w_qkv_t.shape[1] // 3
    assert d_out % num_heads == 0, "d_out must be divisible by num_heads"
    head_dim = d_out // num_heads

    if tq is None:
        tq = min(T, 256)          # v6e/v7x MXU is 256 wide; keep the M dim full
    assert T % tq == 0, "seq_len must be divisible by the query tile size"
    nq = T // tq

    # Reference scaling softmax(scores / head_dim**(-0.5)) == scores * sqrt(head_dim):
    # fold sqrt(head_dim) into the Q columns of W_qkv (one-time, free at runtime).
    scale = float(head_dim) ** 0.5
    wqkv = jnp.concatenate(
        [w_qkv_t[:, :d_out] * scale, w_qkv_t[:, d_out:]], axis=1
    ).astype(jnp.bfloat16)
    wproj_heads = w_proj_t.reshape(num_heads, head_dim, d_out).astype(jnp.bfloat16)
    bproj = b_proj.reshape(1, d_out).astype(jnp.float32)
    xb = x.astype(jnp.bfloat16)

    # ---- 1) QKV projection into head-major layout (fully parallel grid). ----
    proj_kernel = functools.partial(
        _qkv_proj_kernel, num_heads=num_heads, head_dim=head_dim, d_out=d_out)
    qkv_shape = jax.ShapeDtypeStruct((B, num_heads, T, head_dim), jnp.bfloat16)
    q, k, v = pl.pallas_call(
        proj_kernel,
        out_shape=(qkv_shape, qkv_shape, qkv_shape),
        grid_spec=pltpu.PrefetchScalarGridSpec(
            num_scalar_prefetch=0,
            grid=(B, nq),
            in_specs=[
                pl.BlockSpec((1, tq, d_in), lambda b, t: (b, t, 0)),        # x tile
                pl.BlockSpec((d_in, 3 * d_out), lambda b, t: (0, 0)),       # W_qkv
            ],
            out_specs=[
                pl.BlockSpec((1, num_heads, tq, head_dim), lambda b, t: (b, 0, t, 0)),
                pl.BlockSpec((1, num_heads, tq, head_dim), lambda b, t: (b, 0, t, 0)),
                pl.BlockSpec((1, num_heads, tq, head_dim), lambda b, t: (b, 0, t, 0)),
            ],
        ),
        compiler_params=pltpu.CompilerParams(
            dimension_semantics=("parallel", "parallel"),
            vmem_limit_bytes=64 * 1024 * 1024,
        ),
    )(xb, wqkv)

    # ---- 2) Causal flash attention + fused output projection. ----
    attn_kernel = functools.partial(
        _attn_kernel, num_heads=num_heads, tq=tq)
    out = pl.pallas_call(
        attn_kernel,
        out_shape=jax.ShapeDtypeStruct((B, T, d_out), x.dtype),
        grid_spec=pltpu.PrefetchScalarGridSpec(
            num_scalar_prefetch=0,
            grid=(B, nq),
            in_specs=[
                pl.BlockSpec((1, num_heads, tq, head_dim), lambda b, i: (b, 0, i, 0)),  # Q tile
                pl.BlockSpec((1, num_heads, T, head_dim), lambda b, i: (b, 0, 0, 0)),   # K (full T, reused over i)
                pl.BlockSpec((1, num_heads, T, head_dim), lambda b, i: (b, 0, 0, 0)),   # V (full T, reused over i)
                pl.BlockSpec((num_heads, head_dim, d_out), lambda b, i: (0, 0, 0)),     # W_proj (head-major)
                pl.BlockSpec((1, d_out), lambda b, i: (0, 0)),                          # b_proj
            ],
            out_specs=pl.BlockSpec((1, tq, d_out), lambda b, i: (b, i, 0)),
            scratch_shapes=[
                pltpu.VMEM((num_heads, tq, head_dim), jnp.float32),   # online-softmax accumulator
                pltpu.VMEM((num_heads, tq, 1), jnp.float32),          # running max
                pltpu.VMEM((num_heads, tq, 1), jnp.float32),          # running sum
            ],
        ),
        compiler_params=pltpu.CompilerParams(
            dimension_semantics=("parallel", "parallel"),
            vmem_limit_bytes=64 * 1024 * 1024,
        ),
    )(q, k, v, wproj_heads, bproj)
    return out


def _reference(x, w_qkv_t, w_proj_t, b_proj, num_heads):
    """Pure-JAX f32 replica of the PyTorch forward (for verification)."""
    B, T, _ = x.shape
    d_out = w_qkv_t.shape[1] // 3
    hd = d_out // num_heads
    qkv = x @ w_qkv_t                                       # (B, T, 3*d_out)
    qkv = qkv.reshape(B, T, 3, num_heads, hd).transpose(2, 0, 3, 1, 4)
    q, k, v = qkv[0], qkv[1], qkv[2]                        # (B, H, T, hd)
    s = jnp.einsum("bhqd,bhkd->bhqk", q, k)
    mask = jnp.triu(jnp.ones((T, T), dtype=bool), k=1)
    s = jnp.where(mask, -jnp.inf, s)
    w = jax.nn.softmax(s / float(hd) ** (-0.5), axis=-1)
    ctx = jnp.einsum("bhqk,bhkd->bhqd", w, v)
    ctx = ctx.transpose(0, 2, 1, 3).reshape(B, T, d_out)
    return ctx @ w_proj_t + b_proj


if __name__ == "__main__":
    # Small, hardware-friendly shapes: head_dim=128 keeps every per-head slice
    # lane-dense; T=512 with TQ=256 exercises both query tiles, the causal
    # block-skip path, and the inner KV-block loop.
    B, T = 2, 512
    d_in = 128
    d_out = 256
    num_heads = 2            # head_dim = 128

    key = jax.random.PRNGKey(0)
    kx, kqkv, kproj, kb = jax.random.split(key, 4)

    x = jax.random.normal(kx, (B, T, d_in), dtype=jnp.float32)
    # PyTorch Linear stores W as (out, in); pass W^T so the kernel computes x @ W^T + b.
    w_qkv = jax.random.normal(kqkv, (3 * d_out, d_in), dtype=jnp.float32) * 0.01
    w_proj = jax.random.normal(kproj, (d_out, d_out), dtype=jnp.float32) * 0.02
    b_proj = jax.random.normal(kb, (d_out,), dtype=jnp.float32) * 0.02

    out = mha_combined_qkv(x, w_qkv.T, w_proj.T, b_proj,
                           num_heads=num_heads, tq=256)
    out = jax.block_until_ready(out)

    ref = _reference(x, w_qkv.T, w_proj.T, b_proj, num_heads)
    assert out.shape == (B, T, d_out)
    max_err = float(jnp.max(jnp.abs(out - ref)))
    # bf16 matmul operands => relaxed tolerance vs the f32 reference.
    assert jnp.allclose(out, ref, atol=2e-2, rtol=2e-2), \
        f"mismatch vs reference (max abs err {max_err:.2e})"

    print("KERNEL_OK")
</pallas_src>

<mosaic_0001>
module attributes {stable_mosaic.version = 11 : i64} {
  func.func @_qkv_proj_kernel(%arg0: i32, %arg1: i32, %arg2: memref<1x256x128xbf16, #tpu.memory_space<vmem>>, %arg3: memref<128x768xbf16, #tpu.memory_space<vmem>>, %arg4: memref<1x2x256x128xbf16, #tpu.memory_space<vmem>>, %arg5: memref<1x2x256x128xbf16, #tpu.memory_space<vmem>>, %arg6: memref<1x2x256x128xbf16, #tpu.memory_space<vmem>>) attributes {dimension_semantics = [#tpu.dimension_semantics<parallel>, #tpu.dimension_semantics<parallel>], iteration_bounds = array<i64: 2, 2>, scalar_prefetch = 0 : i64, scratch_operands = 0 : i64, tpu.core_type = #tpu.core_type<tc>, window_params = [{transform_indices = @transform_0, window_bounds = array<i64: 1, 256, 128>}, {pipeline_mode = #tpu.pipeline_mode<synchronous>, transform_indices = @transform_1, window_bounds = array<i64: 128, 768>}, {transform_indices = @transform_2, window_bounds = array<i64: 1, 2, 256, 128>}, {transform_indices = @transform_3, window_bounds = array<i64: 1, 2, 256, 128>}, {transform_indices = @transform_4, window_bounds = array<i64: 1, 2, 256, 128>}]} {
    %c0 = arith.constant 0 : index
    %c0_0 = arith.constant 0 : index
    %c0_1 = arith.constant 0 : index
    %0 = vector.load %arg2[%c0, %c0_0, %c0_1] : memref<1x256x128xbf16, #tpu.memory_space<vmem>>, vector<1x256x128xbf16>
    %1 = vector.shape_cast %0 : vector<1x256x128xbf16> to vector<256x128xbf16>
    %c0_2 = arith.constant 0 : index
    %c0_3 = arith.constant 0 : index
    %2 = vector.load %arg3[%c0_2, %c0_3] : memref<128x768xbf16, #tpu.memory_space<vmem>>, vector<128x768xbf16>
    %cst = arith.constant dense<0.000000e+00> : vector<256x768xf32>
    %3 = tpu.matmul %1, %2, %cst {dimension_numbers = #tpu.dot_dimension_numbers<[1], [0], [0], [1], [0, 0, 1, 1], [], []>} : vector<256x128xbf16>, vector<128x768xbf16>, vector<256x768xf32> -> vector<256x768xf32>
    %4 = arith.truncf %3 : vector<256x768xf32> to vector<256x768xbf16>
    %5 = vector.extract_strided_slice %4 {offsets = [0, 0], sizes = [256, 128], strides = [1, 1]} : vector<256x768xbf16> to vector<256x128xbf16>
    %c0_4 = arith.constant 0 : index
    %c0_5 = arith.constant 0 : index
    %c0_6 = arith.constant 0 : index
    %c0_7 = arith.constant 0 : index
    %6 = vector.load %arg4[%c0_4, %c0_5, %c0_6, %c0_7] : memref<1x2x256x128xbf16, #tpu.memory_space<vmem>>, vector<1x1x256x128xbf16>
    %7 = vector.shape_cast %6 : vector<1x1x256x128xbf16> to vector<256x128xbf16>
    %8 = vector.shape_cast %5 : vector<256x128xbf16> to vector<1x1x256x128xbf16>
    tpu.vector_store %arg4[%c0_4, %c0_5, %c0_6, %c0_7], %8 {strides = array<i32>} : memref<1x2x256x128xbf16, #tpu.memory_space<vmem>>, vector<1x1x256x128xbf16>,
    %9 = vector.extract_strided_slice %4 {offsets = [0, 256], sizes = [256, 128], strides = [1, 1]} : vector<256x768xbf16> to vector<256x128xbf16>
    %c0_8 = arith.constant 0 : index
    %c0_9 = arith.constant 0 : index
    %c0_10 = arith.constant 0 : index
    %c0_11 = arith.constant 0 : index
    %10 = vector.load %arg5[%c0_8, %c0_9, %c0_10, %c0_11] : memref<1x2x256x128xbf16, #tpu.memory_space<vmem>>, vector<1x1x256x128xbf16>
    %11 = vector.shape_cast %10 : vector<1x1x256x128xbf16> to vector<256x128xbf16>
    %12 = vector.shape_cast %9 : vector<256x128xbf16> to vector<1x1x256x128xbf16>
    tpu.vector_store %arg5[%c0_8, %c0_9, %c0_10, %c0_11], %12 {strides = array<i32>} : memref<1x2x256x128xbf16, #tpu.memory_space<vmem>>, vector<1x1x256x128xbf16>,
    %13 = vector.extract_strided_slice %4 {offsets = [0, 512], sizes = [256, 128], strides = [1, 1]} : vector<256x768xbf16> to vector<256x128xbf16>
    %c0_12 = arith.constant 0 : index
    %c0_13 = arith.constant 0 : index
    %c0_14 = arith.constant 0 : index
    %c0_15 = arith.constant 0 : index
    %14 = vector.load %arg6[%c0_12, %c0_13, %c0_14, %c0_15] : memref<1x2x256x128xbf16, #tpu.memory_space<vmem>>, vector<1x1x256x128xbf16>
    %15 = vector.shape_cast %14 : vector<1x1x256x128xbf16> to vector<256x128xbf16>
    %16 = vector.shape_cast %13 : vector<256x128xbf16> to vector<1x1x256x128xbf16>
    tpu.vector_store %arg6[%c0_12, %c0_13, %c0_14, %c0_15], %16 {strides = array<i32>} : memref<1x2x256x128xbf16, #tpu.memory_space<vmem>>, vector<1x1x256x128xbf16>,
    %17 = vector.extract_strided_slice %4 {offsets = [0, 128], sizes = [256, 128], strides = [1, 1]} : vector<256x768xbf16> to vector<256x128xbf16>
    %c0_16 = arith.constant 0 : index
    %c1 = arith.constant 1 : index
    %c0_17 = arith.constant 0 : index
    %c0_18 = arith.constant 0 : index
    %18 = vector.load %arg4[%c0_16, %c1, %c0_17, %c0_18] : memref<1x2x256x128xbf16, #tpu.memory_space<vmem>>, vector<1x1x256x128xbf16>
    %19 = vector.shape_cast %18 : vector<1x1x256x128xbf16> to vector<256x128xbf16>
    %20 = vector.shape_cast %17 : vector<256x128xbf16> to vector<1x1x256x128xbf16>
    tpu.vector_store %arg4[%c0_16, %c1, %c0_17, %c0_18], %20 {strides = array<i32>} : memref<1x2x256x128xbf16, #tpu.memory_space<vmem>>, vector<1x1x256x128xbf16>,
    %21 = vector.extract_strided_slice %4 {offsets = [0, 384], sizes = [256, 128], strides = [1, 1]} : vector<256x768xbf16> to vector<256x128xbf16>
    %c0_19 = arith.constant 0 : index
    %c1_20 = arith.constant 1 : index
    %c0_21 = arith.constant 0 : index
    %c0_22 = arith.constant 0 : index
    %22 = vector.load %arg5[%c0_19, %c1_20, %c0_21, %c0_22] : memref<1x2x256x128xbf16, #tpu.memory_space<vmem>>, vector<1x1x256x128xbf16>
    %23 = vector.shape_cast %22 : vector<1x1x256x128xbf16> to vector<256x128xbf16>
    %24 = vector.shape_cast %21 : vector<256x128xbf16> to vector<1x1x256x128xbf16>
    tpu.vector_store %arg5[%c0_19, %c1_20, %c0_21, %c0_22], %24 {strides = array<i32>} : memref<1x2x256x128xbf16, #tpu.memory_space<vmem>>, vector<1x1x256x128xbf16>,
    %25 = vector.extract_strided_slice %4 {offsets = [0, 640], sizes = [256, 128], strides = [1, 1]} : vector<256x768xbf16> to vector<256x128xbf16>
    %c0_23 = arith.constant 0 : index
    %c1_24 = arith.constant 1 : index
    %c0_25 = arith.constant 0 : index
    %c0_26 = arith.constant 0 : index
    %26 = vector.load %arg6[%c0_23, %c1_24, %c0_25, %c0_26] : memref<1x2x256x128xbf16, #tpu.memory_space<vmem>>, vector<1x1x256x128xbf16>
    %27 = vector.shape_cast %26 : vector<1x1x256x128xbf16> to vector<256x128xbf16>
    %28 = vector.shape_cast %25 : vector<256x128xbf16> to vector<1x1x256x128xbf16>
    tpu.vector_store %arg6[%c0_23, %c1_24, %c0_25, %c0_26], %28 {strides = array<i32>} : memref<1x2x256x128xbf16, #tpu.memory_space<vmem>>, vector<1x1x256x128xbf16>,
    return
  }
  func.func @transform_0(%arg0: i32, %arg1: i32) -> (i32, i32, i32) {
    %c0_i32 = arith.constant 0 : i32
    %c0_i32_0 = arith.constant 0 : i32
    return %arg0, %arg1, %c0_i32 : i32, i32, i32
  }
  func.func @transform_1(%arg0: i32, %arg1: i32) -> (i32, i32) {
    %c0_i32 = arith.constant 0 : i32
    %c0_i32_0 = arith.constant 0 : i32
    %c0_i32_1 = arith.constant 0 : i32
    return %c0_i32, %c0_i32_0 : i32, i32
  }
  func.func @transform_2(%arg0: i32, %arg1: i32) -> (i32, i32, i32, i32) {
    %c0_i32 = arith.constant 0 : i32
    %c0_i32_0 = arith.constant 0 : i32
    %c0_i32_1 = arith.constant 0 : i32
    return %arg0, %c0_i32, %arg1, %c0_i32_0 : i32, i32, i32, i32
  }
  func.func @transform_3(%arg0: i32, %arg1: i32) -> (i32, i32, i32, i32) {
    %c0_i32 = arith.constant 0 : i32
    %c0_i32_0 = arith.constant 0 : i32
    %c0_i32_1 = arith.constant 0 : i32
    return %arg0, %c0_i32, %arg1, %c0_i32_0 : i32, i32, i32, i32
  }
  func.func @transform_4(%arg0: i32, %arg1: i32) -> (i32, i32, i32, i32) {
    %c0_i32 = arith.constant 0 : i32
    %c0_i32_0 = arith.constant 0 : i32
    %c0_i32_1 = arith.constant 0 : i32
    return %arg0, %c0_i32, %arg1, %c0_i32_0 : i32, i32, i32, i32
  }
}

</mosaic_0001>

<llo_original>
// kernel: tpu_custom_call.1
$region0: #{tpu_custom_call.1}
  #allocation0 [shape = 'u32[]', space=smem, size = 0x4, offset = 0x4, fixed_abs, tag = 'smem constant byte address 0x4 - core index']
  #allocation1 [shape = 'u32[144,128]{1,0:T(1,128)}', space=vmem, size = 0x12000, scoped, tag = 'internal scratch']
  #allocation11 [shape = 's32[]', space=sflag, size = 0x4, offset = 0, fixed_abs, tag = 'sflag constant byte address 0x0 - dummy sync flag']
  #allocation13 [shape = 's32[]', space=sflag, size = 0x4, offset = 0, fixed_abs, tag = 'sflag constant byte address 0x0 - dummy sync flag']
  #allocation15 [shape = 's32[]', space=sflag, size = 0x4, offset = 0, fixed_abs, tag = 'sflag constant byte address 0x0 - dummy sync flag']
  %s0 = inlined_call_operand.hbm [shape: bf16[2,512,128], index: 0, kind: input, shape index: {}]
  %s1 = inlined_call_operand.hbm [shape: bf16[128,768], index: 1, kind: input, shape index: {}]
  %s2 = inlined_call_operand.hbm [shape: bf16[2,2,512,128], index: 2, kind: output, shape index: {0}]
  %s3 = inlined_call_operand.hbm [shape: bf16[2,2,512,128], index: 3, kind: output, shape index: {1}]
  %s4 = inlined_call_operand.hbm [shape: bf16[2,2,512,128], index: 4, kind: output, shape index: {2}]
  %5 = xla_tuple %s2, %s3, %s4
  %s6 = sld [smem:[#allocation0]]
  $region65: #{tpu_custom_call.1} parent=0
    _
  %s8 = ssub.s32 1, %s6
  %s9 = scalar_select 0, %s8, %s6
  $region1: #{tpu_custom_call.1} parent=0
    #allocation2 [shape = 'u8[131072]{0}', space=vmem, size = 0x20000, scoped, tag = 'input window, operand 0']
    #allocation3 [shape = 's32[2]{0}', space=sflag, size = 0x8, scoped, tag = 'scoped memory for tpu_custom_call.1']
    #allocation4 [shape = 's32[2]{0}', space=sflag, size = 0x8, scoped, tag = 'scoped memory for tpu_custom_call.1']
    #allocation5 [shape = 'u8[196608]{0}', space=vmem, size = 0x30000, scoped, tag = 'input window, operand 1, single buffered']
    #allocation6 [shape = 's32[1]{0}', space=sflag, size = 0x4, scoped, tag = 'scoped memory for tpu_custom_call.1']
    #allocation7 [shape = 'u8[262144]{0}', space=vmem, size = 0x40000, scoped, tag = 'output window, operand 0']
    #allocation8 [shape = 'u8[262144]{0}', space=vmem, size = 0x40000, scoped, tag = 'output window, operand 1']
    #allocation9 [shape = 's32[2]{0}', space=sflag, size = 0x8, scoped, tag = 'scoped memory for tpu_custom_call.1']
    #allocation10 [shape = 'u8[262144]{0}', space=vmem, size = 0x40000, scoped, tag = 'output window, operand 2']
    %10 = vsyncpa [#allocation3], 0
    %s11 = scalar_lea.sflag [#allocation3], 1
    %12 = vsyncpa %s11, 0
    %13 = vsyncpa [#allocation6], 0
    %14 = vsyncpa [#allocation4], 0
    %s15 = scalar_lea.sflag [#allocation4], 1
    %16 = vsyncpa %s15, 0
    %17 = vsyncpa [#allocation9], 0
    %s18 = scalar_lea.sflag [#allocation9], 1
    %19 = vsyncpa %s18, 0
    loop: start=0, step=1, limit=6
    $region2: #{tpu_custom_call.1} parent=1 // loop_pre_header
      _
    $region3: #{tpu_custom_call.1} parent=1 // loop_header
      %s21 = sphi 0, %s25
      %p22 = scmp.ge.s32.totalorder %s21, 6
      %s28 = sphi 0, %s40
      %s29 = sphi 0, %s36
      %s30 = sphi 0, %s28
      %s31 = sphi 0, %s29
      %s32 = sphi 0, %s30
      %s33 = sphi 0, %s31
      %s45 = sphi 0, %s47
      %s48 = sphi 0, %s45
      %s49 = sphi 0, %s48
      %s65 = sphi 0, %s49
      %s69 = sphi 0, %s69
      %s71 = sphi 0, %s69
      %s72 = sphi 0, %s71
      %s86 = sphi 0, %s72
      %s94 = sphi 0, %s96
      %s97 = sphi 0, %s94
      %s98 = sphi 0, %s97
      %s114 = sphi 0, %s98
      %s122 = sphi 0, %s124
      %s125 = sphi 0, %s122
      %s126 = sphi 0, %s125
      %s142 = sphi 0, %s126
      %s150 = sphi 0, %s152
      %s153 = sphi 0, %s150
      %s154 = sphi 0, %s153
      %s170 = sphi 0, %s154
    $region4: #{tpu_custom_call.1} parent=1 // loop_header_branch
      %24 = sbr.rel (%p22) target = $region8
    $region5: #{tpu_custom_call.1} parent=1 // loop_body
      %s26 = ssub.s32 %s21, 1
      %s27 = ssub.s32 %s21, 2
      %s34 = sadd.s32 1, %s29
      %p35 = scmp.ge.s32.totalorder %s34, 2
      %s36 = scalar_select %p35, 0, %s34
      %s37 = sadd.s32 1, %s28
      %s38 = scalar_select %p35, %s37, %s28
      %p39 = scmp.ge.s32.totalorder %s38, 2
      %s40 = scalar_select %p39, 0, %s38
      %s41 = ssub.s32 %s28, %s40
      %s42 = ssub.s32 %s29, %s36
      %s43 = sor.u32 %s41, %s42
      %p44 = scmp.eq.s32.totalorder %s43, 0
      %s46 = sadd.s32 %s45, 1
      %s47 = scalar_select %p44, %s45, %s46
      %p50 = pneg %p44
      %p51 = scmp.eq.s32.totalorder %s21, 3
      %p52 = por %p50, %p51
      %p53 = scmp.ne.s32.totalorder %s45, %s48
      %p54 = scmp.eq.s32.totalorder %s21, 0
      %p55 = por %p53, %p54
      %p56 = scmp.ne.s32.totalorder %s45, %s48
      %p57 = scmp.eq.s32.totalorder %s26, 3
      %p58 = por %p56, %p57
      %p59 = scmp.ne.s32.totalorder %s48, %s49
      %p60 = scmp.eq.s32.totalorder %s26, 0
      %p61 = por %p59, %p60
      %p62 = scmp.ne.s32.totalorder %s48, %s49
      %p63 = scmp.eq.s32.totalorder %s27, 3
      %p64 = por %p62, %p63
      %p66 = scmp.ne.s32.totalorder %s49, %s65
      %p67 = scmp.eq.s32.totalorder %s27, 0
      %p68 = por %p66, %p67
      %s70 = sadd.s32 %s69, 1
      %p73 = scmp.eq.s32.totalorder %s21, 3
      %p74 = scmp.ne.s32.totalorder %s69, %s71
      %p75 = scmp.eq.s32.totalorder %s21, 0
      %p76 = por %p74, %p75
      %p77 = scmp.ne.s32.totalorder %s69, %s71
      %p78 = scmp.eq.s32.totalorder %s26, 3
      %p79 = por %p77, %p78
      %p80 = scmp.ne.s32.totalorder %s71, %s72
      %p81 = scmp.eq.s32.totalorder %s26, 0
      %p82 = por %p80, %p81
      %p83 = scmp.ne.s32.totalorder %s71, %s72
      %p84 = scmp.eq.s32.totalorder %s27, 3
      %p85 = por %p83, %p84
      %p87 = scmp.ne.s32.totalorder %s72, %s86
      %p88 = scmp.eq.s32.totalorder %s27, 0
      %p89 = por %p87, %p88
      %s90 = ssub.s32 %s28, %s40
      %s91 = ssub.s32 %s29, %s36
      %s92 = sor.u32 %s90, %s91
      %p93 = scmp.eq.s32.totalorder %s92, 0
      %s95 = sadd.s32 %s94, 1
      %s96 = scalar_select %p93, %s94, %s95
      %p99 = pneg %p93
      %p100 = scmp.eq.s32.totalorder %s21, 3
      %p101 = por %p99, %p100
      %p102 = scmp.ne.s32.totalorder %s94, %s97
      %p103 = scmp.eq.s32.totalorder %s21, 0
      %p104 = por %p102, %p103
      %p105 = scmp.ne.s32.totalorder %s94, %s97
      %p106 = scmp.eq.s32.totalorder %s26, 3
      %p107 = por %p105, %p106
      %p108 = scmp.ne.s32.totalorder %s97, %s98
      %p109 = scmp.eq.s32.totalorder %s26, 0
      %p110 = por %p108, %p109
      %p111 = scmp.ne.s32.totalorder %s97, %s98
      %p112 = scmp.eq.s32.totalorder %s27, 3
      %p113 = por %p111, %p112
      %p115 = scmp.ne.s32.totalorder %s98, %s114
      %p116 = scmp.eq.s32.totalorder %s27, 0
      %p117 = por %p115, %p116
      %s118 = ssub.s32 %s28, %s40
      %s119 = ssub.s32 %s29, %s36
      %s120 = sor.u32 %s118, %s119
      %p121 = scmp.eq.s32.totalorder %s120, 0
      %s123 = sadd.s32 %s122, 1
      %s124 = scalar_select %p121, %s122, %s123
      %p127 = pneg %p121
      %p128 = scmp.eq.s32.totalorder %s21, 3
      %p129 = por %p127, %p128
      %p130 = scmp.ne.s32.totalorder %s122, %s125
      %p131 = scmp.eq.s32.totalorder %s21, 0
      %p132 = por %p130, %p131
      %p133 = scmp.ne.s32.totalorder %s122, %s125
      %p134 = scmp.eq.s32.totalorder %s26, 3
      %p135 = por %p133, %p134
      %p136 = scmp.ne.s32.totalorder %s125, %s126
      %p137 = scmp.eq.s32.totalorder %s26, 0
      %p138 = por %p136, %p137
      %p139 = scmp.ne.s32.totalorder %s125, %s126
      %p140 = scmp.eq.s32.totalorder %s27, 3
      %p141 = por %p139, %p140
      %p143 = scmp.ne.s32.totalorder %s126, %s142
      %p144 = scmp.eq.s32.totalorder %s27, 0
      %p145 = por %p143, %p144
      %s146 = ssub.s32 %s28, %s40
      %s147 = ssub.s32 %s29, %s36
      %s148 = sor.u32 %s146, %s147
      %p149 = scmp.eq.s32.totalorder %s148, 0
      %s151 = sadd.s32 %s150, 1
      %s152 = scalar_select %p149, %s150, %s151
      %p155 = pneg %p149
      %p156 = scmp.eq.s32.totalorder %s21, 3
      %p157 = por %p155, %p156
      %p158 = scmp.ne.s32.totalorder %s150, %s153
      %p159 = scmp.eq.s32.totalorder %s21, 0
      %p160 = por %p158, %p159
      %p161 = scmp.ne.s32.totalorder %s150, %s153
      %p162 = scmp.eq.s32.totalorder %s26, 3
      %p163 = por %p161, %p162
      %p164 = scmp.ne.s32.totalorder %s153, %s154
      %p165 = scmp.eq.s32.totalorder %s26, 0
      %p166 = por %p164, %p165
      %p167 = scmp.ne.s32.totalorder %s153, %s154
      %p168 = scmp.eq.s32.totalorder %s27, 3
      %p169 = por %p167, %p168
      %p171 = scmp.ne.s32.totalorder %s154, %s170
      %p172 = scmp.eq.s32.totalorder %s27, 0
      %p173 = por %p171, %p172
      %p174 = scmp.le.s32.totalorder 1, %s21
      %p175 = scmp.lt.s32.totalorder %s21, 5
      %p176 = pnand %p174, %p175
      %p177 = pneg %p176
      // Predicated region
      $region9: #{tpu_custom_call.1} parent=5 // pred_check
        _
      $region10: #{tpu_custom_call.1} parent=5 // pred_check_branch
        %179 = sbr.rel (%p176) target = $region12
      $region11: #{tpu_custom_call.1} parent=5 // pred_region
        %s180 = ssub.s32 %s21, 1
        // Predicated region
        $region13: #{tpu_custom_call.1} parent=11 // pred_check
          %p181 = pneg %p82
        $region14: #{tpu_custom_call.1} parent=11 // pred_check_branch
          %183 = sbr.rel (%p181) target = $region16
        $region15: #{tpu_custom_call.1} parent=11 // pred_region
          %s185 = ssub.s32 6144, 6144
          %186 = vsyncadd [#allocation6], %s185
          %s187 = sshll.u32 [#allocation5], 4
          %s188 = int_to_ptr.vmem [resolvable:$true] %s187
          %193 = dma.hbm_to_vmem [thread:$0]  %s1, 6144, %s188, [#allocation6], 384, 384, 24
        $region16: #{tpu_custom_call.1} parent=11 // pred_fallthru
          _
      $region12: #{tpu_custom_call.1} parent=5 // pred_fallthru
        _
      %p194 = scmp.lt.s32.totalorder %s21, 4
      // Predicated region
      $region17: #{tpu_custom_call.1} parent=5 // pred_check
        %p195 = pneg %p194
      $region18: #{tpu_custom_call.1} parent=5 // pred_check_branch
        %197 = sbr.rel (%p195) target = $region20
      $region19: #{tpu_custom_call.1} parent=5 // pred_region
        // Predicated region
        $region21: #{tpu_custom_call.1} parent=19 // pred_check
          %p198 = pneg %p55
        $region22: #{tpu_custom_call.1} parent=19 // pred_check_branch
          %200 = sbr.rel (%p198) target = $region24
        $region23: #{tpu_custom_call.1} parent=19 // pred_region
          %s201 = sand.u32 %s45, 1
          %s202 = scalar_lea.sflag [#allocation3], %s201
          %s203 = sand.u32 %s45, 1
          %s204 = smul.addr %s203, 128
          %s205 = scalar_lea.vmem [#allocation2], %s204
          %s206 = smul.u32 32, %s29
          %s208 = ssub.s32 2048, 2048
          %209 = vsyncadd %s202, %s208
          %s210 = smul.addr %s28, 64
          %s211 = sadd.s32 %s206, %s210
          %s212 = smul.addr %s211, 64
          %s213 = scalar_lea.hbm %s0, %s212
          %s214 = sshll.u32 %s205, 4
          %s215 = int_to_ptr.vmem [resolvable:$true] %s214
          %220 = dma.hbm_to_vmem [thread:$0]  %s213, 2048, %s215, %s202, 64, 64, 4
        $region24: #{tpu_custom_call.1} parent=19 // pred_fallthru
          _
      $region20: #{tpu_custom_call.1} parent=5 // pred_fallthru
        _
      %p221 = scmp.le.s32.totalorder 1, %s21
      %p222 = scmp.lt.s32.totalorder %s21, 5
      %p223 = pnand %p221, %p222
      %p224 = pneg %p223
      // Predicated region
      $region25: #{tpu_custom_call.1} parent=5 // pred_check
        _
      $region26: #{tpu_custom_call.1} parent=5 // pred_check_branch
        %226 = sbr.rel (%p223) target = $region28
      $region27: #{tpu_custom_call.1} parent=5 // pred_region
        %s227 = ssub.s32 %s21, 1
        %s228 = sand.u32 %s48, 1
        %s229 = scalar_lea.sflag [#allocation3], %s228
        %s230 = sand.u32 %s48, 1
        %s231 = smul.addr %s230, 128
        %s232 = scalar_lea.vmem [#allocation2], %s231
        // Predicated region
        $region29: #{tpu_custom_call.1} parent=27 // pred_check
          %p233 = pneg %p61
        $region30: #{tpu_custom_call.1} parent=27 // pred_check_branch
          %235 = sbr.rel (%p233) target = $region32
        $region31: #{tpu_custom_call.1} parent=27 // pred_region
          %236 = dma.done %s229, 2048
        $region32: #{tpu_custom_call.1} parent=27 // pred_fallthru
          _
        // Predicated region
        $region33: #{tpu_custom_call.1} parent=27 // pred_check
          %p237 = pneg %p82
        $region34: #{tpu_custom_call.1} parent=27 // pred_check_branch
          %239 = sbr.rel (%p237) target = $region36
        $region35: #{tpu_custom_call.1} parent=27 // pred_region
          %240 = dma.done [#allocation6], 6144
        $region36: #{tpu_custom_call.1} parent=27 // pred_fallthru
          _
        %s241 = sand.u32 %s48, 1
        %s242 = scalar_lea.sflag [#allocation3], %s241
        %s243 = sand.u32 %s48, 1
        %s244 = smul.addr %s243, 128
        %s245 = scalar_lea.vmem [#allocation2], %s244
        %p246 = pneg %p61
        %p247 = pneg %p58
        %p248 = pneg %p82
        %p249 = pneg %p79
        %p250 = pneg %p110
        %p251 = pneg %p107
        %s252 = sand.u32 %s97, 1
        %s253 = scalar_lea.sflag [#allocation4], %s252
        %s254 = sand.u32 %s97, 1
        %s255 = smul.addr %s254, 256
        %s256 = scalar_lea.vmem [#allocation7], %s255
        %p257 = pneg %p138
        %p258 = pneg %p135
        %s259 = sand.u32 %s26, 1
        %s260 = scalar_lea.sflag [#allocation9], %s259
        %s261 = sand.u32 %s125, 1
        %s262 = smul.addr %s261, 256
        %s263 = scalar_lea.vmem [#allocation8], %s262
        %p264 = pneg %p166
        %p265 = pneg %p163
        %s266 = sand.u32 %s26, 1
        %s267 = scalar_lea.sflag [#allocation9], %s266
        %s268 = sand.u32 %s153, 1
        %s269 = smul.addr %s268, 256
        %s270 = scalar_lea.vmem [#allocation10], %s269
        %s271 = smul.u32 32, %s31
        %s272 = smul.u32 32, %s31
        %s273 = smul.u32 32, %s31
        %s274 = smul.u32 32, %s31
        %v276 = vld [vmem:[%s232] sm:$0xf]
        %v277 = vld [vmem:[%s232 + $0x4] sm:$0xf]
        %v278 = vld [vmem:[%s232 + $0x8] sm:$0xf]
        %v279 = vld [vmem:[%s232 + $0xc] sm:$0xf]
        %v280 = vld [vmem:[%s232 + $0x10] sm:$0xf]
        %v281 = vld [vmem:[%s232 + $0x14] sm:$0xf]
        %v282 = vld [vmem:[%s232 + $0x18] sm:$0xf]
        %v283 = vld [vmem:[%s232 + $0x1c] sm:$0xf]
        %v284 = vld [vmem:[%s232 + $0x20] sm:$0xf]
        %v285 = vld [vmem:[%s232 + $0x24] sm:$0xf]
        %v286 = vld [vmem:[%s232 + $0x28] sm:$0xf]
        %v287 = vld [vmem:[%s232 + $0x2c] sm:$0xf]
        %v288 = vld [vmem:[%s232 + $0x30] sm:$0xf]
        %v289 = vld [vmem:[%s232 + $0x34] sm:$0xf]
        %v290 = vld [vmem:[%s232 + $0x38] sm:$0xf]
        %v291 = vld [vmem:[%s232 + $0x3c] sm:$0xf]
        %v292 = vld [vmem:[%s232 + $0x40] sm:$0xf]
        %v293 = vld [vmem:[%s232 + $0x44] sm:$0xf]
        %v294 = vld [vmem:[%s232 + $0x48] sm:$0xf]
        %v295 = vld [vmem:[%s232 + $0x4c] sm:$0xf]
        %v296 = vld [vmem:[%s232 + $0x50] sm:$0xf]
        %v297 = vld [vmem:[%s232 + $0x54] sm:$0xf]
        %v298 = vld [vmem:[%s232 + $0x58] sm:$0xf]
        %v299 = vld [vmem:[%s232 + $0x5c] sm:$0xf]
        %v300 = vld [vmem:[%s232 + $0x60] sm:$0xf]
        %v301 = vld [vmem:[%s232 + $0x64] sm:$0xf]
        %v302 = vld [vmem:[%s232 + $0x68] sm:$0xf]
        %v303 = vld [vmem:[%s232 + $0x6c] sm:$0xf]
        %v304 = vld [vmem:[%s232 + $0x70] sm:$0xf]
        %v305 = vld [vmem:[%s232 + $0x74] sm:$0xf]
        %v306 = vld [vmem:[%s232 + $0x78] sm:$0xf]
        %v307 = vld [vmem:[%s232 + $0x7c] sm:$0xf]
        %v308 = vld [vmem:[#allocation5] sm:$0xff]
        %v309 = vld [vmem:[#allocation5 + $0x8] sm:$0xff]
        %v310 = vld [vmem:[#allocation5 + $0x10] sm:$0xff]
        %v311 = vld [vmem:[#allocation5 + $0x18] sm:$0xff]
        %v312 = vld [vmem:[#allocation5 + $0x20] sm:$0xff]
        %v313 = vld [vmem:[#allocation5 + $0x28] sm:$0xff]
        %v314 = vld [vmem:[#allocation5 + $0x30] sm:$0xff]
        %v315 = vld [vmem:[#allocation5 + $0x38] sm:$0xff]
        %v316 = vld [vmem:[#allocation5 + $0x40] sm:$0xff]
        %v317 = vld [vmem:[#allocation5 + $0x48] sm:$0xff]
        %v318 = vld [vmem:[#allocation5 + $0x50] sm:$0xff]
        %v319 = vld [vmem:[#allocation5 + $0x58] sm:$0xff]
        %v320 = vld [vmem:[#allocation5 + $0x60] sm:$0xff]
        %v321 = vld [vmem:[#allocation5 + $0x68] sm:$0xff]
        %v322 = vld [vmem:[#allocation5 + $0x70] sm:$0xff]
        %v323 = vld [vmem:[#allocation5 + $0x78] sm:$0xff]
        %v324 = vld [vmem:[#allocation5 + $0x80] sm:$0xff]
        %v325 = vld [vmem:[#allocation5 + $0x88] sm:$0xff]
        %v326 = vld [vmem:[#allocation5 + $0x90] sm:$0xff]
        %v327 = vld [vmem:[#allocation5 + $0x98] sm:$0xff]
        %v328 = vld [vmem:[#allocation5 + $0xa0] sm:$0xff]
        %v329 = vld [vmem:[#allocation5 + $0xa8] sm:$0xff]
        %v330 = vld [vmem:[#allocation5 + $0xb0] sm:$0xff]
        %v331 = vld [vmem:[#allocation5 + $0xb8] sm:$0xff]
        %v332 = vld [vmem:[#allocation5 + $0xc0] sm:$0xff]
        %v333 = vld [vmem:[#allocation5 + $0xc8] sm:$0xff]
        %v334 = vld [vmem:[#allocation5 + $0xd0] sm:$0xff]
        %v335 = vld [vmem:[#allocation5 + $0xd8] sm:$0xff]
        %v336 = vld [vmem:[#allocation5 + $0xe0] sm:$0xff]
        %v337 = vld [vmem:[#allocation5 + $0xe8] sm:$0xff]
        %v338 = vld [vmem:[#allocation5 + $0xf0] sm:$0xff]
        %v339 = vld [vmem:[#allocation5 + $0xf8] sm:$0xff]
        %v340 = vld [vmem:[#allocation5 + $0x100] sm:$0xff]
        %v341 = vld [vmem:[#allocation5 + $0x108] sm:$0xff]
        %v342 = vld [vmem:[#allocation5 + $0x110] sm:$0xff]
        %v343 = vld [vmem:[#allocation5 + $0x118] sm:$0xff]
        %v344 = vld [vmem:[#allocation5 + $0x120] sm:$0xff]
        %v345 = vld [vmem:[#allocation5 + $0x128] sm:$0xff]
        %v346 = vld [vmem:[#allocation5 + $0x130] sm:$0xff]
        %v347 = vld [vmem:[#allocation5 + $0x138] sm:$0xff]
        %v348 = vld [vmem:[#allocation5 + $0x140] sm:$0xff]
        %v349 = vld [vmem:[#allocation5 + $0x148] sm:$0xff]
        %v350 = vld [vmem:[#allocation5 + $0x150] sm:$0xff]
        %v351 = vld [vmem:[#allocation5 + $0x158] sm:$0xff]
        %v352 = vld [vmem:[#allocation5 + $0x160] sm:$0xff]
        %v353 = vld [vmem:[#allocation5 + $0x168] sm:$0xff]
        %v354 = vld [vmem:[#allocation5 + $0x170] sm:$0xff]
        %v355 = vld [vmem:[#allocation5 + $0x178] sm:$0xff]
        %v388 = vunpack.c.l.b16 %v276
        %v389 = vunpack.c.l.b16 %v277
        %v390 = vunpack.c.l.b16 %v278
        %v391 = vunpack.c.l.b16 %v279
        %v392 = vunpack.c.l.b16 %v280
        %v393 = vunpack.c.l.b16 %v281
        %v394 = vunpack.c.l.b16 %v282
        %v395 = vunpack.c.l.b16 %v283
        %v396 = vunpack.c.l.b16 %v284
        %v397 = vunpack.c.l.b16 %v285
        %v398 = vunpack.c.l.b16 %v286
        %v399 = vunpack.c.l.b16 %v287
        %v400 = vunpack.c.l.b16 %v288
        %v401 = vunpack.c.l.b16 %v289
        %v402 = vunpack.c.l.b16 %v290
        %v403 = vunpack.c.l.b16 %v291
        %v404 = vunpack.c.l.b16 %v292
        %v405 = vunpack.c.l.b16 %v293
        %v406 = vunpack.c.l.b16 %v294
        %v407 = vunpack.c.l.b16 %v295
        %v408 = vunpack.c.l.b16 %v296
        %v409 = vunpack.c.l.b16 %v297
        %v410 = vunpack.c.l.b16 %v298
        %v411 = vunpack.c.l.b16 %v299
        %v412 = vunpack.c.l.b16 %v300
        %v413 = vunpack.c.l.b16 %v301
        %v414 = vunpack.c.l.b16 %v302
        %v415 = vunpack.c.l.b16 %v303
        %v416 = vunpack.c.l.b16 %v304
        %v417 = vunpack.c.l.b16 %v305
        %v418 = vunpack.c.l.b16 %v306
        %v419 = vunpack.c.l.b16 %v307
        %v420 = vpack.c.b16 %v389, %v388
        %v421 = vpack.c.b16 %v391, %v390
        %v422 = vpack.c.b16 %v393, %v392
        %v423 = vpack.c.b16 %v395, %v394
        %v424 = vpack.c.b16 %v397, %v396
        %v425 = vpack.c.b16 %v399, %v398
        %v426 = vpack.c.b16 %v401, %v400
        %v427 = vpack.c.b16 %v403, %v402
        %v428 = vpack.c.b16 %v405, %v404
        %v429 = vpack.c.b16 %v407, %v406
        %v430 = vpack.c.b16 %v409, %v408
        %v431 = vpack.c.b16 %v411, %v410
        %v432 = vpack.c.b16 %v413, %v412
        %v433 = vpack.c.b16 %v415, %v414
        %v434 = vpack.c.b16 %v417, %v416
        %v435 = vpack.c.b16 %v419, %v418
        %v500 = vunpack.c.l.b16 %v308
        %v501 = vunpack.c.h.b16 %v308
        %v502 = vunpack.c.l.b16 %v309
        %v503 = vunpack.c.h.b16 %v309
        %v504 = vunpack.c.l.b16 %v310
        %v505 = vunpack.c.h.b16 %v310
        %v506 = vunpack.c.l.b16 %v311
        %v507 = vunpack.c.h.b16 %v311
        %v508 = vunpack.c.l.b16 %v312
        %v509 = vunpack.c.h.b16 %v312
        %v510 = vunpack.c.l.b16 %v313
        %v511 = vunpack.c.h.b16 %v313
        %v512 = vunpack.c.l.b16 %v314
        %v513 = vunpack.c.h.b16 %v314
        %v514 = vunpack.c.l.b16 %v315
        %v515 = vunpack.c.h.b16 %v315
        %v516 = vunpack.c.l.b16 %v316
        %v517 = vunpack.c.h.b16 %v316
        %v518 = vunpack.c.l.b16 %v317
        %v519 = vunpack.c.h.b16 %v317
        %v520 = vunpack.c.l.b16 %v318
        %v521 = vunpack.c.h.b16 %v318
        %v522 = vunpack.c.l.b16 %v319
        %v523 = vunpack.c.h.b16 %v319
        %v524 = vunpack.c.l.b16 %v320
        %v525 = vunpack.c.h.b16 %v320
        %v526 = vunpack.c.l.b16 %v321
        %v527 = vunpack.c.h.b16 %v321
        %v528 = vunpack.c.l.b16 %v322
        %v529 = vunpack.c.h.b16 %v322
        %v530 = vunpack.c.l.b16 %v323
        %v531 = vunpack.c.h.b16 %v323
        %v532 = vunpack.c.l.b16 %v324
        %v533 = vunpack.c.h.b16 %v324
        %v534 = vunpack.c.l.b16 %v325
        %v535 = vunpack.c.h.b16 %v325
        %v536 = vunpack.c.l.b16 %v326
        %v537 = vunpack.c.h.b16 %v326
        %v538 = vunpack.c.l.b16 %v327
        %v539 = vunpack.c.h.b16 %v327
        %v540 = vunpack.c.l.b16 %v328
        %v541 = vunpack.c.h.b16 %v328
        %v542 = vunpack.c.l.b16 %v329
        %v543 = vunpack.c.h.b16 %v329
        %v544 = vunpack.c.l.b16 %v330
        %v545 = vunpack.c.h.b16 %v330
        %v546 = vunpack.c.l.b16 %v331
        %v547 = vunpack.c.h.b16 %v331
        %v548 = vunpack.c.l.b16 %v332
        %v549 = vunpack.c.h.b16 %v332
        %v550 = vunpack.c.l.b16 %v333
        %v551 = vunpack.c.h.b16 %v333
        %v552 = vunpack.c.l.b16 %v334
        %v553 = vunpack.c.h.b16 %v334
        %v554 = vunpack.c.l.b16 %v335
        %v555 = vunpack.c.h.b16 %v335
        %v556 = vunpack.c.l.b16 %v336
        %v557 = vunpack.c.h.b16 %v336
        %v558 = vunpack.c.l.b16 %v337
        %v559 = vunpack.c.h.b16 %v337
        %v560 = vunpack.c.l.b16 %v338
        %v561 = vunpack.c.h.b16 %v338
        %v562 = vunpack.c.l.b16 %v339
        %v563 = vunpack.c.h.b16 %v339
        %v564 = vunpack.c.l.b16 %v340
        %v565 = vunpack.c.h.b16 %v340
        %v566 = vunpack.c.l.b16 %v341
        %v567 = vunpack.c.h.b16 %v341
        %v568 = vunpack.c.l.b16 %v342
        %v569 = vunpack.c.h.b16 %v342
        %v570 = vunpack.c.l.b16 %v343
        %v571 = vunpack.c.h.b16 %v343
        %v572 = vunpack.c.l.b16 %v344
        %v573 = vunpack.c.h.b16 %v344
        %v574 = vunpack.c.l.b16 %v345
        %v575 = vunpack.c.h.b16 %v345
        %v576 = vunpack.c.l.b16 %v346
        %v577 = vunpack.c.h.b16 %v346
        %v578 = vunpack.c.l.b16 %v347
        %v579 = vunpack.c.h.b16 %v347
        %v580 = vunpack.c.l.b16 %v348
        %v581 = vunpack.c.h.b16 %v348
        %v582 = vunpack.c.l.b16 %v349
        %v583 = vunpack.c.h.b16 %v349
        %v584 = vunpack.c.l.b16 %v350
        %v585 = vunpack.c.h.b16 %v350
        %v586 = vunpack.c.l.b16 %v351
        %v587 = vunpack.c.h.b16 %v351
        %v588 = vunpack.c.l.b16 %v352
        %v589 = vunpack.c.h.b16 %v352
        %v590 = vunpack.c.l.b16 %v353
        %v591 = vunpack.c.h.b16 %v353
        %v592 = vunpack.c.l.b16 %v354
        %v593 = vunpack.c.h.b16 %v354
        %v594 = vunpack.c.l.b16 %v355
        %v595 = vunpack.c.h.b16 %v355
        %v596 = vpack.c.b16 %v506, %v500
        %v597 = vpack.c.b16 %v507, %v501
        %v598 = vpack.c.b16 %v508, %v502
        %v599 = vpack.c.b16 %v509, %v503
        %v600 = vpack.c.b16 %v510, %v504
        %v601 = vpack.c.b16 %v511, %v505
        %v602 = vpack.c.b16 %v518, %v512
        %v603 = vpack.c.b16 %v519, %v513
        %v604 = vpack.c.b16 %v520, %v514
        %v605 = vpack.c.b16 %v521, %v515
        %v606 = vpack.c.b16 %v522, %v516
        %v607 = vpack.c.b16 %v523, %v517
        %v608 = vpack.c.b16 %v530, %v524
        %v609 = vpack.c.b16 %v531, %v525
        %v610 = vpack.c.b16 %v532, %v526
        %v611 = vpack.c.b16 %v533, %v527
        %v612 = vpack.c.b16 %v534, %v528
        %v613 = vpack.c.b16 %v535, %v529
        %v614 = vpack.c.b16 %v542, %v536
        %v615 = vpack.c.b16 %v543, %v537
        %v616 = vpack.c.b16 %v544, %v538
        %v617 = vpack.c.b16 %v545, %v539
        %v618 = vpack.c.b16 %v546, %v540
        %v619 = vpack.c.b16 %v547, %v541
        %v620 = vpack.c.b16 %v554, %v548
        %v621 = vpack.c.b16 %v555, %v549
        %v622 = vpack.c.b16 %v556, %v550
        %v623 = vpack.c.b16 %v557, %v551
        %v624 = vpack.c.b16 %v558, %v552
        %v625 = vpack.c.b16 %v559, %v553
        %v626 = vpack.c.b16 %v566, %v560
        %v627 = vpack.c.b16 %v567, %v561
        %v628 = vpack.c.b16 %v568, %v562
        %v629 = vpack.c.b16 %v569, %v563
        %v630 = vpack.c.b16 %v570, %v564
        %v631 = vpack.c.b16 %v571, %v565
        %v632 = vpack.c.b16 %v578, %v572
        %v633 = vpack.c.b16 %v579, %v573
        %v634 = vpack.c.b16 %v580, %v574
        %v635 = vpack.c.b16 %v581, %v575
        %v636 = vpack.c.b16 %v582, %v576
        %v637 = vpack.c.b16 %v583, %v577
        %v638 = vpack.c.b16 %v590, %v584
        %v639 = vpack.c.b16 %v591, %v585
        %v640 = vpack.c.b16 %v592, %v586
        %v641 = vpack.c.b16 %v593, %v587
        %v642 = vpack.c.b16 %v594, %v588
        %v643 = vpack.c.b16 %v595, %v589
        %692 = vmatprep.subr.bf16.mxu0 %v639
        %693 = vmatpush1.bf16.msra.mxu0 %v638
        %694 = vmatprep.subr.bf16.mxu0 %v633
        %695 = vmatpush1.bf16.msra.mxu0 %v632
        %696 = vmatprep.subr.bf16.mxu0 %v627
        %697 = vmatpush1.bf16.msra.mxu0 %v626
        %698 = vmatprep.subr.bf16.mxu0 %v621
        %699 = vmatpush1.bf16.msra.mxu0 %v620
        %700 = vmatprep.subr.bf16.mxu0 %v615
        %701 = vmatpush1.bf16.msra.mxu0 %v614
        %702 = vmatprep.subr.bf16.mxu0 %v609
        %703 = vmatpush1.bf16.msra.mxu0 %v608
        %704 = vmatprep.subr.bf16.mxu0 %v603
        %705 = vmatpush1.bf16.msra.mxu0 %v602
        %706 = vmatprep.subr.bf16.mxu0 %v597
        %707 = vmatpush1.bf16.msra.mxu0 %v596
        %708 = vmatprep.subr.bf16.mxu0 0
        %709 = vmatpush2.bf16.msra.mxu0 0
        %710 = vmatprep.subr.bf16.mxu0 0
        %711 = vmatpush2.bf16.msra.mxu0 0
        %712 = vmatprep.subr.bf16.mxu0 0
        %713 = vmatpush2.bf16.msra.mxu0 0
        %714 = vmatprep.subr.bf16.mxu0 0
        %715 = vmatpush2.bf16.msra.mxu0 0
        %716 = vmatprep.subr.bf16.mxu0 0
        %717 = vmatpush2.bf16.msra.mxu0 0
        %718 = vmatprep.subr.bf16.mxu0 0
        %719 = vmatpush2.bf16.msra.mxu0 0
        %720 = vmatprep.subr.bf16.mxu0 0
        %721 = vmatpush2.bf16.msra.mxu0 0
        %722 = vmatprep.subr.bf16.mxu0 0
        %723 = vmatpush2.bf16.msra.mxu0 0
        %724 = vmatprep.mubr.bf16.mxu0 0
        %725 = vmatmul.mubr.bf16.gmra.mxu0 %v420
        %v726 = vpop.f32.mrf.mxu0
        %v727 = vadd.f32 0.0, %v726
        %v728 = vpop.f32.mrf.mxu0
        %v729 = vadd.f32 0.0, %v728
        %v730 = vpop.f32.mrf.mxu0
        %v731 = vadd.f32 0.0, %v730
        %v732 = vpop.f32.mrf.mxu0
        %v733 = vadd.f32 0.0, %v732
        %734 = vmatprep.mubr.bf16.mxu0 0
        %735 = vmatmul.mubr.bf16.gmra.mxu0 %v421
        %v736 = vpop.f32.mrf.mxu0
        %v737 = vadd.f32 0.0, %v736
        %v738 = vpop.f32.mrf.mxu0
        %v739 = vadd.f32 0.0, %v738
        %v740 = vpop.f32.mrf.mxu0
        %v741 = vadd.f32 0.0, %v740
        %v742 = vpop.f32.mrf.mxu0
        %v743 = vadd.f32 0.0, %v742
        %744 = vmatprep.mubr.bf16.mxu0 0
        %745 = vmatmul.mubr.bf16.gmra.mxu0 %v422
        %v746 = vpop.f32.mrf.mxu0
        %v747 = vadd.f32 0.0, %v746
        %v748 = vpop.f32.mrf.mxu0
        %v749 = vadd.f32 0.0, %v748
        %v750 = vpop.f32.mrf.mxu0
        %v751 = vadd.f32 0.0, %v750
        %v752 = vpop.f32.mrf.mxu0
        %v753 = vadd.f32 0.0, %v752
        %754 = vmatprep.mubr.bf16.mxu0 0
        %755 = vmatmul.mubr.bf16.gmra.mxu0 %v423
        %v756 = vpop.f32.mrf.mxu0
        %v757 = vadd.f32 0.0, %v756
        %v758 = vpop.f32.mrf.mxu0
        %v759 = vadd.f32 0.0, %v758
        %v760 = vpop.f32.mrf.mxu0
        %v761 = vadd.f32 0.0, %v760
        %v762 = vpop.f32.mrf.mxu0
        %v763 = vadd.f32 0.0, %v762
        %764 = vmatprep.mubr.bf16.mxu0 0
        %765 = vmatmul.mubr.bf16.gmra.mxu0 %v424
        %v766 = vpop.f32.mrf.mxu0
        %v767 = vadd.f32 0.0, %v766
        %v768 = vpop.f32.mrf.mxu0
        %v769 = vadd.f32 0.0, %v768
        %v770 = vpop.f32.mrf.mxu0
        %v771 = vadd.f32 0.0, %v770
        %v772 = vpop.f32.mrf.mxu0
        %v773 = vadd.f32 0.0, %v772
        %774 = vmatprep.mubr.bf16.mxu0 0
        %775 = vmatmul.mubr.bf16.gmra.mxu0 %v425
        %v776 = vpop.f32.mrf.mxu0
        %v777 = vadd.f32 0.0, %v776
        %v778 = vpop.f32.mrf.mxu0
        %v779 = vadd.f32 0.0, %v778
        %v780 = vpop.f32.mrf.mxu0
        %v781 = vadd.f32 0.0, %v780
        %v782 = vpop.f32.mrf.mxu0
        %v783 = vadd.f32 0.0, %v782
        %784 = vmatprep.mubr.bf16.mxu0 0
        %785 = vmatmul.mubr.bf16.gmra.mxu0 %v426
        %v786 = vpop.f32.mrf.mxu0
        %v787 = vadd.f32 0.0, %v786
        %v788 = vpop.f32.mrf.mxu0
        %v789 = vadd.f32 0.0, %v788
        %v790 = vpop.f32.mrf.mxu0
        %v791 = vadd.f32 0.0, %v790
        %v792 = vpop.f32.mrf.mxu0
        %v793 = vadd.f32 0.0, %v792
        %794 = vmatprep.mubr.bf16.mxu0 0
        %795 = vmatmul.mubr.bf16.gmra.mxu0 %v427
        %v796 = vpop.f32.mrf.mxu0
        %v797 = vadd.f32 0.0, %v796
        %v798 = vpop.f32.mrf.mxu0
        %v799 = vadd.f32 0.0, %v798
        %v800 = vpop.f32.mrf.mxu0
        %v801 = vadd.f32 0.0, %v800
        %v802 = vpop.f32.mrf.mxu0
        %v803 = vadd.f32 0.0, %v802
        %804 = vmatprep.mubr.bf16.mxu0 0
        %805 = vmatmul.mubr.bf16.gmra.mxu0 %v428
        %v806 = vpop.f32.mrf.mxu0
        %v807 = vadd.f32 0.0, %v806
        %v808 = vpop.f32.mrf.mxu0
        %v809 = vadd.f32 0.0, %v808
        %v810 = vpop.f32.mrf.mxu0
        %v811 = vadd.f32 0.0, %v810
        %v812 = vpop.f32.mrf.mxu0
        %v813 = vadd.f32 0.0, %v812
        %814 = vmatprep.mubr.bf16.mxu0 0
        %815 = vmatmul.mubr.bf16.gmra.mxu0 %v429
        %v816 = vpop.f32.mrf.mxu0
        %v817 = vadd.f32 0.0, %v816
        %v818 = vpop.f32.mrf.mxu0
        %v819 = vadd.f32 0.0, %v818
        %v820 = vpop.f32.mrf.mxu0
        %v821 = vadd.f32 0.0, %v820
        %v822 = vpop.f32.mrf.mxu0
        %v823 = vadd.f32 0.0, %v822
        %824 = vmatprep.mubr.bf16.mxu0 0
        %825 = vmatmul.mubr.bf16.gmra.mxu0 %v430
        %v826 = vpop.f32.mrf.mxu0
        %v827 = vadd.f32 0.0, %v826
        %v828 = vpop.f32.mrf.mxu0
        %v829 = vadd.f32 0.0, %v828
        %v830 = vpop.f32.mrf.mxu0
        %v831 = vadd.f32 0.0, %v830
        %v832 = vpop.f32.mrf.mxu0
        %v833 = vadd.f32 0.0, %v832
        %834 = vmatprep.mubr.bf16.mxu0 0
        %835 = vmatmul.mubr.bf16.gmra.mxu0 %v431
        %v836 = vpop.f32.mrf.mxu0
        %v837 = vadd.f32 0.0, %v836
        %v838 = vpop.f32.mrf.mxu0
        %v839 = vadd.f32 0.0, %v838
        %v840 = vpop.f32.mrf.mxu0
        %v841 = vadd.f32 0.0, %v840
        %v842 = vpop.f32.mrf.mxu0
        %v843 = vadd.f32 0.0, %v842
        %844 = vmatprep.mubr.bf16.mxu0 0
        %845 = vmatmul.mubr.bf16.gmra.mxu0 %v432
        %v846 = vpop.f32.mrf.mxu0
        %v847 = vadd.f32 0.0, %v846
        %v848 = vpop.f32.mrf.mxu0
        %v849 = vadd.f32 0.0, %v848
        %v850 = vpop.f32.mrf.mxu0
        %v851 = vadd.f32 0.0, %v850
        %v852 = vpop.f32.mrf.mxu0
        %v853 = vadd.f32 0.0, %v852
        %854 = vmatprep.mubr.bf16.mxu0 0
        %855 = vmatmul.mubr.bf16.gmra.mxu0 %v433
        %v856 = vpop.f32.mrf.mxu0
        %v857 = vadd.f32 0.0, %v856
        %v858 = vpop.f32.mrf.mxu0
        %v859 = vadd.f32 0.0, %v858
        %v860 = vpop.f32.mrf.mxu0
        %v861 = vadd.f32 0.0, %v860
        %v862 = vpop.f32.mrf.mxu0
        %v863 = vadd.f32 0.0, %v862
        %864 = vmatprep.mubr.bf16.mxu0 0
        %865 = vmatmul.mubr.bf16.gmra.mxu0 %v434
        %v866 = vpop.f32.mrf.mxu0
        %v867 = vadd.f32 0.0, %v866
        %v868 = vpop.f32.mrf.mxu0
        %v869 = vadd.f32 0.0, %v868
        %v870 = vpop.f32.mrf.mxu0
        %v871 = vadd.f32 0.0, %v870
        %v872 = vpop.f32.mrf.mxu0
        %v873 = vadd.f32 0.0, %v872
        %874 = vmatprep.mubr.bf16.mxu0 0
        %875 = vmatmul.mubr.bf16.gmra.mxu0 %v435
        %v876 = vpop.f32.mrf.mxu0
        %v877 = vadd.f32 0.0, %v876
        %v878 = vpop.f32.mrf.mxu0
        %v879 = vadd.f32 0.0, %v878
        %v880 = vpop.f32.mrf.mxu0
        %v881 = vadd.f32 0.0, %v880
        %v882 = vpop.f32.mrf.mxu0
        %v883 = vadd.f32 0.0, %v882
        %884 = vdwg.mxu0
        %885 = vmatprep.subr.bf16.mxu0 %v641
        %886 = vmatpush1.bf16.msra.mxu0 %v640
        %887 = vmatprep.subr.bf16.mxu0 %v635
        %888 = vmatpush1.bf16.msra.mxu0 %v634
        %889 = vmatprep.subr.bf16.mxu0 %v629
        %890 = vmatpush1.bf16.msra.mxu0 %v628
        %891 = vmatprep.subr.bf16.mxu0 %v623
        %892 = vmatpush1.bf16.msra.mxu0 %v622
        %893 = vmatprep.subr.bf16.mxu0 %v617
        %894 = vmatpush1.bf16.msra.mxu0 %v616
        %895 = vmatprep.subr.bf16.mxu0 %v611
        %896 = vmatpush1.bf16.msra.mxu0 %v610
        %897 = vmatprep.subr.bf16.mxu0 %v605
        %898 = vmatpush1.bf16.msra.mxu0 %v604
        %899 = vmatprep.subr.bf16.mxu0 %v599
        %900 = vmatpush1.bf16.msra.mxu0 %v598
        %901 = vmatprep.subr.bf16.mxu0 0
        %902 = vmatpush2.bf16.msra.mxu0 0
        %903 = vmatprep.subr.bf16.mxu0 0
        %904 = vmatpush2.bf16.msra.mxu0 0
        %905 = vmatprep.subr.bf16.mxu0 0
        %906 = vmatpush2.bf16.msra.mxu0 0
        %907 = vmatprep.subr.bf16.mxu0 0
        %908 = vmatpush2.bf16.msra.mxu0 0
        %909 = vmatprep.subr.bf16.mxu0 0
        %910 = vmatpush2.bf16.msra.mxu0 0
        %911 = vmatprep.subr.bf16.mxu0 0
        %912 = vmatpush2.bf16.msra.mxu0 0
        %913 = vmatprep.subr.bf16.mxu0 0
        %914 = vmatpush2.bf16.msra.mxu0 0
        %915 = vmatprep.subr.bf16.mxu0 0
        %916 = vmatpush2.bf16.msra.mxu0 0
        %917 = vmatprep.mubr.bf16.mxu0 0
        %918 = vmatmul.mubr.bf16.gmra.mxu0 %v420
        %v919 = vpop.f32.mrf.mxu0
        %v920 = vadd.f32 0.0, %v919
        %v921 = vpop.f32.mrf.mxu0
        %v922 = vadd.f32 0.0, %v921
        %v923 = vpop.f32.mrf.mxu0
        %v924 = vadd.f32 0.0, %v923
        %v925 = vpop.f32.mrf.mxu0
        %v926 = vadd.f32 0.0, %v925
        %927 = vmatprep.mubr.bf16.mxu0 0
        %928 = vmatmul.mubr.bf16.gmra.mxu0 %v421
        %v929 = vpop.f32.mrf.mxu0
        %v930 = vadd.f32 0.0, %v929
        %v931 = vpop.f32.mrf.mxu0
        %v932 = vadd.f32 0.0, %v931
        %v933 = vpop.f32.mrf.mxu0
        %v934 = vadd.f32 0.0, %v933
        %v935 = vpop.f32.mrf.mxu0
        %v936 = vadd.f32 0.0, %v935
        %937 = vmatprep.mubr.bf16.mxu0 0
        %938 = vmatmul.mubr.bf16.gmra.mxu0 %v422
        %v939 = vpop.f32.mrf.mxu0
        %v940 = vadd.f32 0.0, %v939
        %v941 = vpop.f32.mrf.mxu0
        %v942 = vadd.f32 0.0, %v941
        %v943 = vpop.f32.mrf.mxu0
        %v944 = vadd.f32 0.0, %v943
        %v945 = vpop.f32.mrf.mxu0
        %v946 = vadd.f32 0.0, %v945
        %947 = vmatprep.mubr.bf16.mxu0 0
        %948 = vmatmul.mubr.bf16.gmra.mxu0 %v423
        %v949 = vpop.f32.mrf.mxu0
        %v950 = vadd.f32 0.0, %v949
        %v951 = vpop.f32.mrf.mxu0
        %v952 = vadd.f32 0.0, %v951
        %v953 = vpop.f32.mrf.mxu0
        %v954 = vadd.f32 0.0, %v953
        %v955 = vpop.f32.mrf.mxu0
        %v956 = vadd.f32 0.0, %v955
        %957 = vmatprep.mubr.bf16.mxu0 0
        %958 = vmatmul.mubr.bf16.gmra.mxu0 %v424
        %v959 = vpop.f32.mrf.mxu0
        %v960 = vadd.f32 0.0, %v959
        %v961 = vpop.f32.mrf.mxu0
        %v962 = vadd.f32 0.0, %v961
        %v963 = vpop.f32.mrf.mxu0
        %v964 = vadd.f32 0.0, %v963
        %v965 = vpop.f32.mrf.mxu0
        %v966 = vadd.f32 0.0, %v965
        %967 = vmatprep.mubr.bf16.mxu0 0
        %968 = vmatmul.mubr.bf16.gmra.mxu0 %v425
        %v969 = vpop.f32.mrf.mxu0
        %v970 = vadd.f32 0.0, %v969
        %v971 = vpop.f32.mrf.mxu0
        %v972 = vadd.f32 0.0, %v971
        %v973 = vpop.f32.mrf.mxu0
        %v974 = vadd.f32 0.0, %v973
        %v975 = vpop.f32.mrf.mxu0
        %v976 = vadd.f32 0.0, %v975
        %977 = vmatprep.mubr.bf16.mxu0 0
        %978 = vmatmul.mubr.bf16.gmra.mxu0 %v426
        %v979 = vpop.f32.mrf.mxu0
        %v980 = vadd.f32 0.0, %v979
        %v981 = vpop.f32.mrf.mxu0
        %v982 = vadd.f32 0.0, %v981
        %v983 = vpop.f32.mrf.mxu0
        %v984 = vadd.f32 0.0, %v983
        %v985 = vpop.f32.mrf.mxu0
        %v986 = vadd.f32 0.0, %v985
        %987 = vmatprep.mubr.bf16.mxu0 0
        %988 = vmatmul.mubr.bf16.gmra.mxu0 %v427
        %v989 = vpop.f32.mrf.mxu0
        %v990 = vadd.f32 0.0, %v989
        %v991 = vpop.f32.mrf.mxu0
        %v992 = vadd.f32 0.0, %v991
        %v993 = vpop.f32.mrf.mxu0
        %v994 = vadd.f32 0.0, %v993
        %v995 = vpop.f32.mrf.mxu0
        %v996 = vadd.f32 0.0, %v995
        %997 = vmatprep.mubr.bf16.mxu0 0
        %998 = vmatmul.mubr.bf16.gmra.mxu0 %v428
        %v999 = vpop.f32.mrf.mxu0
        %v1000 = vadd.f32 0.0, %v999
        %v1001 = vpop.f32.mrf.mxu0
        %v1002 = vadd.f32 0.0, %v1001
        %v1003 = vpop.f32.mrf.mxu0
        %v1004 = vadd.f32 0.0, %v1003
        %v1005 = vpop.f32.mrf.mxu0
        %v1006 = vadd.f32 0.0, %v1005
        %1007 = vmatprep.mubr.bf16.mxu0 0
        %1008 = vmatmul.mubr.bf16.gmra.mxu0 %v429
        %v1009 = vpop.f32.mrf.mxu0
        %v1010 = vadd.f32 0.0, %v1009
        %v1011 = vpop.f32.mrf.mxu0
        %v1012 = vadd.f32 0.0, %v1011
        %v1013 = vpop.f32.mrf.mxu0
        %v1014 = vadd.f32 0.0, %v1013
        %v1015 = vpop.f32.mrf.mxu0
        %v1016 = vadd.f32 0.0, %v1015
        %1017 = vmatprep.mubr.bf16.mxu0 0
        %1018 = vmatmul.mubr.bf16.gmra.mxu0 %v430
        %v1019 = vpop.f32.mrf.mxu0
        %v1020 = vadd.f32 0.0, %v1019
        %v1021 = vpop.f32.mrf.mxu0
        %v1022 = vadd.f32 0.0, %v1021
        %v1023 = vpop.f32.mrf.mxu0
        %v1024 = vadd.f32 0.0, %v1023
        %v1025 = vpop.f32.mrf.mxu0
        %v1026 = vadd.f32 0.0, %v1025
        %1027 = vmatprep.mubr.bf16.mxu0 0
        %1028 = vmatmul.mubr.bf16.gmra.mxu0 %v431
        %v1029 = vpop.f32.mrf.mxu0
        %v1030 = vadd.f32 0.0, %v1029
        %v1031 = vpop.f32.mrf.mxu0
        %v1032 = vadd.f32 0.0, %v1031
        %v1033 = vpop.f32.mrf.mxu0
        %v1034 = vadd.f32 0.0, %v1033
        %v1035 = vpop.f32.mrf.mxu0
        %v1036 = vadd.f32 0.0, %v1035
        %1037 = vmatprep.mubr.bf16.mxu0 0
        %1038 = vmatmul.mubr.bf16.gmra.mxu0 %v432
        %v1039 = vpop.f32.mrf.mxu0
        %v1040 = vadd.f32 0.0, %v1039
        %v1041 = vpop.f32.mrf.mxu0
        %v1042 = vadd.f32 0.0, %v1041
        %v1043 = vpop.f32.mrf.mxu0
        %v1044 = vadd.f32 0.0, %v1043
        %v1045 = vpop.f32.mrf.mxu0
        %v1046 = vadd.f32 0.0, %v1045
        %1047 = vmatprep.mubr.bf16.mxu0 0
        %1048 = vmatmul.mubr.bf16.gmra.mxu0 %v433
        %v1049 = vpop.f32.mrf.mxu0
        %v1050 = vadd.f32 0.0, %v1049
        %v1051 = vpop.f32.mrf.mxu0
        %v1052 = vadd.f32 0.0, %v1051
        %v1053 = vpop.f32.mrf.mxu0
        %v1054 = vadd.f32 0.0, %v1053
        %v1055 = vpop.f32.mrf.mxu0
        %v1056 = vadd.f32 0.0, %v1055
        %1057 = vmatprep.mubr.bf16.mxu0 0
        %1058 = vmatmul.mubr.bf16.gmra.mxu0 %v434
        %v1059 = vpop.f32.mrf.mxu0
        %v1060 = vadd.f32 0.0, %v1059
        %v1061 = vpop.f32.mrf.mxu0
        %v1062 = vadd.f32 0.0, %v1061
        %v1063 = vpop.f32.mrf.mxu0
        %v1064 = vadd.f32 0.0, %v1063
        %v1065 = vpop.f32.mrf.mxu0
        %v1066 = vadd.f32 0.0, %v1065
        %1067 = vmatprep.mubr.bf16.mxu0 0
        %1068 = vmatmul.mubr.bf16.gmra.mxu0 %v435
        %v1069 = vpop.f32.mrf.mxu0
        %v1070 = vadd.f32 0.0, %v1069
        %v1071 = vpop.f32.mrf.mxu0
        %v1072 = vadd.f32 0.0, %v1071
        %v1073 = vpop.f32.mrf.mxu0
        %v1074 = vadd.f32 0.0, %v1073
        %v1075 = vpop.f32.mrf.mxu0
        %v1076 = vadd.f32 0.0, %v1075
        %1077 = vdwg.mxu0
        %1078 = vmatprep.subr.bf16.mxu0 %v643
        %1079 = vmatpush1.bf16.msra.mxu0 %v642
        %1080 = vmatprep.subr.bf16.mxu0 %v637
        %1081 = vmatpush1.bf16.msra.mxu0 %v636
        %1082 = vmatprep.subr.bf16.mxu0 %v631
        %1083 = vmatpush1.bf16.msra.mxu0 %v630
        %1084 = vmatprep.subr.bf16.mxu0 %v625
        %1085 = vmatpush1.bf16.msra.mxu0 %v624
        %1086 = vmatprep.subr.bf16.mxu0 %v619
        %1087 = vmatpush1.bf16.msra.mxu0 %v618
        %1088 = vmatprep.subr.bf16.mxu0 %v613
        %1089 = vmatpush1.bf16.msra.mxu0 %v612
        %1090 = vmatprep.subr.bf16.mxu0 %v607
        %1091 = vmatpush1.bf16.msra.mxu0 %v606
        %1092 = vmatprep.subr.bf16.mxu0 %v601
        %1093 = vmatpush1.bf16.msra.mxu0 %v600
        %1094 = vmatprep.subr.bf16.mxu0 0
        %1095 = vmatpush2.bf16.msra.mxu0 0
        %1096 = vmatprep.subr.bf16.mxu0 0
        %1097 = vmatpush2.bf16.msra.mxu0 0
        %1098 = vmatprep.subr.bf16.mxu0 0
        %1099 = vmatpush2.bf16.msra.mxu0 0
        %1100 = vmatprep.subr.bf16.mxu0 0
        %1101 = vmatpush2.bf16.msra.mxu0 0
        %1102 = vmatprep.subr.bf16.mxu0 0
        %1103 = vmatpush2.bf16.msra.mxu0 0
        %1104 = vmatprep.subr.bf16.mxu0 0
        %1105 = vmatpush2.bf16.msra.mxu0 0
        %1106 = vmatprep.subr.bf16.mxu0 0
        %1107 = vmatpush2.bf16.msra.mxu0 0
        %1108 = vmatprep.subr.bf16.mxu0 0
        %1109 = vmatpush2.bf16.msra.mxu0 0
        %1110 = vmatprep.mubr.bf16.mxu0 0
        %1111 = vmatmul.mubr.bf16.gmra.mxu0 %v420
        %v1112 = vpop.f32.mrf.mxu0
        %v1113 = vadd.f32 0.0, %v1112
        %v1114 = vpop.f32.mrf.mxu0
        %v1115 = vadd.f32 0.0, %v1114
        %v1116 = vpop.f32.mrf.mxu0
        %v1117 = vadd.f32 0.0, %v1116
        %v1118 = vpop.f32.mrf.mxu0
        %v1119 = vadd.f32 0.0, %v1118
        %1120 = vmatprep.mubr.bf16.mxu0 0
        %1121 = vmatmul.mubr.bf16.gmra.mxu0 %v421
        %v1122 = vpop.f32.mrf.mxu0
        %v1123 = vadd.f32 0.0, %v1122
        %v1124 = vpop.f32.mrf.mxu0
        %v1125 = vadd.f32 0.0, %v1124
        %v1126 = vpop.f32.mrf.mxu0
        %v1127 = vadd.f32 0.0, %v1126
        %v1128 = vpop.f32.mrf.mxu0
        %v1129 = vadd.f32 0.0, %v1128
        %1130 = vmatprep.mubr.bf16.mxu0 0
        %1131 = vmatmul.mubr.bf16.gmra.mxu0 %v422
        %v1132 = vpop.f32.mrf.mxu0
        %v1133 = vadd.f32 0.0, %v1132
        %v1134 = vpop.f32.mrf.mxu0
        %v1135 = vadd.f32 0.0, %v1134
        %v1136 = vpop.f32.mrf.mxu0
        %v1137 = vadd.f32 0.0, %v1136
        %v1138 = vpop.f32.mrf.mxu0
        %v1139 = vadd.f32 0.0, %v1138
        %1140 = vmatprep.mubr.bf16.mxu0 0
        %1141 = vmatmul.mubr.bf16.gmra.mxu0 %v423
        %v1142 = vpop.f32.mrf.mxu0
        %v1143 = vadd.f32 0.0, %v1142
        %v1144 = vpop.f32.mrf.mxu0
        %v1145 = vadd.f32 0.0, %v1144
        %v1146 = vpop.f32.mrf.mxu0
        %v1147 = vadd.f32 0.0, %v1146
        %v1148 = vpop.f32.mrf.mxu0
        %v1149 = vadd.f32 0.0, %v1148
        %1150 = vmatprep.mubr.bf16.mxu0 0
        %1151 = vmatmul.mubr.bf16.gmra.mxu0 %v424
        %v1152 = vpop.f32.mrf.mxu0
        %v1153 = vadd.f32 0.0, %v1152
        %v1154 = vpop.f32.mrf.mxu0
        %v1155 = vadd.f32 0.0, %v1154
        %v1156 = vpop.f32.mrf.mxu0
        %v1157 = vadd.f32 0.0, %v1156
        %v1158 = vpop.f32.mrf.mxu0
        %v1159 = vadd.f32 0.0, %v1158
        %1160 = vmatprep.mubr.bf16.mxu0 0
        %1161 = vmatmul.mubr.bf16.gmra.mxu0 %v425
        %v1162 = vpop.f32.mrf.mxu0
        %v1163 = vadd.f32 0.0, %v1162
        %v1164 = vpop.f32.mrf.mxu0
        %v1165 = vadd.f32 0.0, %v1164
        %v1166 = vpop.f32.mrf.mxu0
        %v1167 = vadd.f32 0.0, %v1166
        %v1168 = vpop.f32.mrf.mxu0
        %v1169 = vadd.f32 0.0, %v1168
        %1170 = vmatprep.mubr.bf16.mxu0 0
        %1171 = vmatmul.mubr.bf16.gmra.mxu0 %v426
        %v1172 = vpop.f32.mrf.mxu0
        %v1173 = vadd.f32 0.0, %v1172
        %v1174 = vpop.f32.mrf.mxu0
        %v1175 = vadd.f32 0.0, %v1174
        %v1176 = vpop.f32.mrf.mxu0
        %v1177 = vadd.f32 0.0, %v1176
        %v1178 = vpop.f32.mrf.mxu0
        %v1179 = vadd.f32 0.0, %v1178
        %1180 = vmatprep.mubr.bf16.mxu0 0
        %1181 = vmatmul.mubr.bf16.gmra.mxu0 %v427
        %v1182 = vpop.f32.mrf.mxu0
        %v1183 = vadd.f32 0.0, %v1182
        %v1184 = vpop.f32.mrf.mxu0
        %v1185 = vadd.f32 0.0, %v1184
        %v1186 = vpop.f32.mrf.mxu0
        %v1187 = vadd.f32 0.0, %v1186
        %v1188 = vpop.f32.mrf.mxu0
        %v1189 = vadd.f32 0.0, %v1188
        %1190 = vmatprep.mubr.bf16.mxu0 0
        %1191 = vmatmul.mubr.bf16.gmra.mxu0 %v428
        %v1192 = vpop.f32.mrf.mxu0
        %v1193 = vadd.f32 0.0, %v1192
        %v1194 = vpop.f32.mrf.mxu0
        %v1195 = vadd.f32 0.0, %v1194
        %v1196 = vpop.f32.mrf.mxu0
        %v1197 = vadd.f32 0.0, %v1196
        %v1198 = vpop.f32.mrf.mxu0
        %v1199 = vadd.f32 0.0, %v1198
        %1200 = vmatprep.mubr.bf16.mxu0 0
        %1201 = vmatmul.mubr.bf16.gmra.mxu0 %v429
        %v1202 = vpop.f32.mrf.mxu0
        %v1203 = vadd.f32 0.0, %v1202
        %v1204 = vpop.f32.mrf.mxu0
        %v1205 = vadd.f32 0.0, %v1204
        %v1206 = vpop.f32.mrf.mxu0
        %v1207 = vadd.f32 0.0, %v1206
        %v1208 = vpop.f32.mrf.mxu0
        %v1209 = vadd.f32 0.0, %v1208
        %1210 = vmatprep.mubr.bf16.mxu0 0
        %1211 = vmatmul.mubr.bf16.gmra.mxu0 %v430
        %v1212 = vpop.f32.mrf.mxu0
        %v1213 = vadd.f32 0.0, %v1212
        %v1214 = vpop.f32.mrf.mxu0
        %v1215 = vadd.f32 0.0, %v1214
        %v1216 = vpop.f32.mrf.mxu0
        %v1217 = vadd.f32 0.0, %v1216
        %v1218 = vpop.f32.mrf.mxu0
        %v1219 = vadd.f32 0.0, %v1218
        %1220 = vmatprep.mubr.bf16.mxu0 0
        %1221 = vmatmul.mubr.bf16.gmra.mxu0 %v431
        %v1222 = vpop.f32.mrf.mxu0
        %v1223 = vadd.f32 0.0, %v1222
        %v1224 = vpop.f32.mrf.mxu0
        %v1225 = vadd.f32 0.0, %v1224
        %v1226 = vpop.f32.mrf.mxu0
        %v1227 = vadd.f32 0.0, %v1226
        %v1228 = vpop.f32.mrf.mxu0
        %v1229 = vadd.f32 0.0, %v1228
        %1230 = vmatprep.mubr.bf16.mxu0 0
        %1231 = vmatmul.mubr.bf16.gmra.mxu0 %v432
        %v1232 = vpop.f32.mrf.mxu0
        %v1233 = vadd.f32 0.0, %v1232
        %v1234 = vpop.f32.mrf.mxu0
        %v1235 = vadd.f32 0.0, %v1234
        %v1236 = vpop.f32.mrf.mxu0
        %v1237 = vadd.f32 0.0, %v1236
        %v1238 = vpop.f32.mrf.mxu0
        %v1239 = vadd.f32 0.0, %v1238
        %1240 = vmatprep.mubr.bf16.mxu0 0
        %1241 = vmatmul.mubr.bf16.gmra.mxu0 %v433
        %v1242 = vpop.f32.mrf.mxu0
        %v1243 = vadd.f32 0.0, %v1242
        %v1244 = vpop.f32.mrf.mxu0
        %v1245 = vadd.f32 0.0, %v1244
        %v1246 = vpop.f32.mrf.mxu0
        %v1247 = vadd.f32 0.0, %v1246
        %v1248 = vpop.f32.mrf.mxu0
        %v1249 = vadd.f32 0.0, %v1248
        %1250 = vmatprep.mubr.bf16.mxu0 0
        %1251 = vmatmul.mubr.bf16.gmra.mxu0 %v434
        %v1252 = vpop.f32.mrf.mxu0
        %v1253 = vadd.f32 0.0, %v1252
        %v1254 = vpop.f32.mrf.mxu0
        %v1255 = vadd.f32 0.0, %v1254
        %v1256 = vpop.f32.mrf.mxu0
        %v1257 = vadd.f32 0.0, %v1256
        %v1258 = vpop.f32.mrf.mxu0
        %v1259 = vadd.f32 0.0, %v1258
        %1260 = vmatprep.mubr.bf16.mxu0 0
        %1261 = vmatmul.mubr.bf16.gmra.mxu0 %v435
        %v1262 = vpop.f32.mrf.mxu0
        %v1263 = vadd.f32 0.0, %v1262
        %v1264 = vpop.f32.mrf.mxu0
        %v1265 = vadd.f32 0.0, %v1264
        %v1266 = vpop.f32.mrf.mxu0
        %v1267 = vadd.f32 0.0, %v1266
        %v1268 = vpop.f32.mrf.mxu0
        %v1269 = vadd.f32 0.0, %v1268
        %1270 = vdwg.mxu0
        %v1271 = vpack.c.bf16 %v731, %v727
        %v1272 = vpack.c.bf16 %v733, %v729
        %v1273 = vpack.c.bf16 %v924, %v920
        %v1274 = vpack.c.bf16 %v926, %v922
        %v1275 = vpack.c.bf16 %v1117, %v1113
        %v1276 = vpack.c.bf16 %v1119, %v1115
        %v1277 = vpack.c.bf16 %v741, %v737
        %v1278 = vpack.c.bf16 %v743, %v739
        %v1279 = vpack.c.bf16 %v934, %v930
        %v1280 = vpack.c.bf16 %v936, %v932
        %v1281 = vpack.c.bf16 %v1127, %v1123
        %v1282 = vpack.c.bf16 %v1129, %v1125
        %v1283 = vpack.c.bf16 %v751, %v747
        %v1284 = vpack.c.bf16 %v753, %v749
        %v1285 = vpack.c.bf16 %v944, %v940
        %v1286 = vpack.c.bf16 %v946, %v942
        %v1287 = vpack.c.bf16 %v1137, %v1133
        %v1288 = vpack.c.bf16 %v1139, %v1135
        %v1289 = vpack.c.bf16 %v761, %v757
        %v1290 = vpack.c.bf16 %v763, %v759
        %v1291 = vpack.c.bf16 %v954, %v950
        %v1292 = vpack.c.bf16 %v956, %v952
        %v1293 = vpack.c.bf16 %v1147, %v1143
        %v1294 = vpack.c.bf16 %v1149, %v1145
        %v1295 = vpack.c.bf16 %v771, %v767
        %v1296 = vpack.c.bf16 %v773, %v769
        %v1297 = vpack.c.bf16 %v964, %v960
        %v1298 = vpack.c.bf16 %v966, %v962
        %v1299 = vpack.c.bf16 %v1157, %v1153
        %v1300 = vpack.c.bf16 %v1159, %v1155
        %v1301 = vpack.c.bf16 %v781, %v777
        %v1302 = vpack.c.bf16 %v783, %v779
        %v1303 = vpack.c.bf16 %v974, %v970
        %v1304 = vpack.c.bf16 %v976, %v972
        %v1305 = vpack.c.bf16 %v1167, %v1163
        %v1306 = vpack.c.bf16 %v1169, %v1165
        %v1307 = vpack.c.bf16 %v791, %v787
        %v1308 = vpack.c.bf16 %v793, %v789
        %v1309 = vpack.c.bf16 %v984, %v980
        %v1310 = vpack.c.bf16 %v986, %v982
        %v1311 = vpack.c.bf16 %v1177, %v1173
        %v1312 = vpack.c.bf16 %v1179, %v1175
        %v1313 = vpack.c.bf16 %v801, %v797
        %v1314 = vpack.c.bf16 %v803, %v799
        %v1315 = vpack.c.bf16 %v994, %v990
        %v1316 = vpack.c.bf16 %v996, %v992
        %v1317 = vpack.c.bf16 %v1187, %v1183
        %v1318 = vpack.c.bf16 %v1189, %v1185
        %v1319 = vpack.c.bf16 %v811, %v807
        %v1320 = vpack.c.bf16 %v813, %v809
        %v1321 = vpack.c.bf16 %v1004, %v1000
        %v1322 = vpack.c.bf16 %v1006, %v1002
        %v1323 = vpack.c.bf16 %v1197, %v1193
        %v1324 = vpack.c.bf16 %v1199, %v1195
        %v1325 = vpack.c.bf16 %v821, %v817
        %v1326 = vpack.c.bf16 %v823, %v819
        %v1327 = vpack.c.bf16 %v1014, %v1010
        %v1328 = vpack.c.bf16 %v1016, %v1012
        %v1329 = vpack.c.bf16 %v1207, %v1203
        %v1330 = vpack.c.bf16 %v1209, %v1205
        %v1331 = vpack.c.bf16 %v831, %v827
        %v1332 = vpack.c.bf16 %v833, %v829
        %v1333 = vpack.c.bf16 %v1024, %v1020
        %v1334 = vpack.c.bf16 %v1026, %v1022
        %v1335 = vpack.c.bf16 %v1217, %v1213
        %v1336 = vpack.c.bf16 %v1219, %v1215
        %v1337 = vpack.c.bf16 %v841, %v837
        %v1338 = vpack.c.bf16 %v843, %v839
        %v1339 = vpack.c.bf16 %v1034, %v1030
        %v1340 = vpack.c.bf16 %v1036, %v1032
        %v1341 = vpack.c.bf16 %v1227, %v1223
        %v1342 = vpack.c.bf16 %v1229, %v1225
        %v1343 = vpack.c.bf16 %v851, %v847
        %v1344 = vpack.c.bf16 %v853, %v849
        %v1345 = vpack.c.bf16 %v1044, %v1040
        %v1346 = vpack.c.bf16 %v1046, %v1042
        %v1347 = vpack.c.bf16 %v1237, %v1233
        %v1348 = vpack.c.bf16 %v1239, %v1235
        %v1349 = vpack.c.bf16 %v861, %v857
        %v1350 = vpack.c.bf16 %v863, %v859
        %v1351 = vpack.c.bf16 %v1054, %v1050
        %v1352 = vpack.c.bf16 %v1056, %v1052
        %v1353 = vpack.c.bf16 %v1247, %v1243
        %v1354 = vpack.c.bf16 %v1249, %v1245
        %v1355 = vpack.c.bf16 %v871, %v867
        %v1356 = vpack.c.bf16 %v873, %v869
        %v1357 = vpack.c.bf16 %v1064, %v1060
        %v1358 = vpack.c.bf16 %v1066, %v1062
        %v1359 = vpack.c.bf16 %v1257, %v1253
        %v1360 = vpack.c.bf16 %v1259, %v1255
        %v1361 = vpack.c.bf16 %v881, %v877
        %v1362 = vpack.c.bf16 %v883, %v879
        %v1363 = vpack.c.bf16 %v1074, %v1070
        %v1364 = vpack.c.bf16 %v1076, %v1072
        %v1365 = vpack.c.bf16 %v1267, %v1263
        %v1366 = vpack.c.bf16 %v1269, %v1265
        %v1383 = vunpack.c.l.b16 %v1271
        %v1384 = vunpack.c.h.b16 %v1271
        %v1385 = vunpack.c.l.b16 %v1277
        %v1386 = vunpack.c.h.b16 %v1277
        %v1387 = vunpack.c.l.b16 %v1283
        %v1388 = vunpack.c.h.b16 %v1283
        %v1389 = vunpack.c.l.b16 %v1289
        %v1390 = vunpack.c.h.b16 %v1289
        %v1391 = vunpack.c.l.b16 %v1295
        %v1392 = vunpack.c.h.b16 %v1295
        %v1393 = vunpack.c.l.b16 %v1301
        %v1394 = vunpack.c.h.b16 %v1301
        %v1395 = vunpack.c.l.b16 %v1307
        %v1396 = vunpack.c.h.b16 %v1307
        %v1397 = vunpack.c.l.b16 %v1313
        %v1398 = vunpack.c.h.b16 %v1313
        %v1399 = vunpack.c.l.b16 %v1319
        %v1400 = vunpack.c.h.b16 %v1319
        %v1401 = vunpack.c.l.b16 %v1325
        %v1402 = vunpack.c.h.b16 %v1325
        %v1403 = vunpack.c.l.b16 %v1331
        %v1404 = vunpack.c.h.b16 %v1331
        %v1405 = vunpack.c.l.b16 %v1337
        %v1406 = vunpack.c.h.b16 %v1337
        %v1407 = vunpack.c.l.b16 %v1343
        %v1408 = vunpack.c.h.b16 %v1343
        %v1409 = vunpack.c.l.b16 %v1349
        %v1410 = vunpack.c.h.b16 %v1349
        %v1411 = vunpack.c.l.b16 %v1355
        %v1412 = vunpack.c.h.b16 %v1355
        %v1413 = vunpack.c.l.b16 %v1361
        %v1414 = vunpack.c.h.b16 %v1361
        %v1415 = vpack.c.b16 %v1383, %v1383
        %v1416 = vpack.c.b16 %v1384, %v1384
        %v1417 = vpack.c.b16 %v1385, %v1385
        %v1418 = vpack.c.b16 %v1386, %v1386
        %v1419 = vpack.c.b16 %v1387, %v1387
        %v1420 = vpack.c.b16 %v1388, %v1388
        %v1421 = vpack.c.b16 %v1389, %v1389
        %v1422 = vpack.c.b16 %v1390, %v1390
        %v1423 = vpack.c.b16 %v1391, %v1391
        %v1424 = vpack.c.b16 %v1392, %v1392
        %v1425 = vpack.c.b16 %v1393, %v1393
        %v1426 = vpack.c.b16 %v1394, %v1394
        %v1427 = vpack.c.b16 %v1395, %v1395
        %v1428 = vpack.c.b16 %v1396, %v1396
        %v1429 = vpack.c.b16 %v1397, %v1397
        %v1430 = vpack.c.b16 %v1398, %v1398
        %v1431 = vpack.c.b16 %v1399, %v1399
        %v1432 = vpack.c.b16 %v1400, %v1400
        %v1433 = vpack.c.b16 %v1401, %v1401
        %v1434 = vpack.c.b16 %v1402, %v1402
        %v1435 = vpack.c.b16 %v1403, %v1403
        %v1436 = vpack.c.b16 %v1404, %v1404
        %v1437 = vpack.c.b16 %v1405, %v1405
        %v1438 = vpack.c.b16 %v1406, %v1406
        %v1439 = vpack.c.b16 %v1407, %v1407
        %v1440 = vpack.c.b16 %v1408, %v1408
        %v1441 = vpack.c.b16 %v1409, %v1409
        %v1442 = vpack.c.b16 %v1410, %v1410
        %v1443 = vpack.c.b16 %v1411, %v1411
        %v1444 = vpack.c.b16 %v1412, %v1412
        %v1445 = vpack.c.b16 %v1413, %v1413
        %v1446 = vpack.c.b16 %v1414, %v1414
        %1479 = vst [vmem:[%s256] sm:$0xf] %v1415
        %1480 = vst [vmem:[%s256 + $0x4] sm:$0xf] %v1416
        %1481 = vst [vmem:[%s256 + $0x8] sm:$0xf] %v1417
        %1482 = vst [vmem:[%s256 + $0xc] sm:$0xf] %v1418
        %1483 = vst [vmem:[%s256 + $0x10] sm:$0xf] %v1419
        %1484 = vst [vmem:[%s256 + $0x14] sm:$0xf] %v1420
        %1485 = vst [vmem:[%s256 + $0x18] sm:$0xf] %v1421
        %1486 = vst [vmem:[%s256 + $0x1c] sm:$0xf] %v1422
        %1487 = vst [vmem:[%s256 + $0x20] sm:$0xf] %v1423
        %1488 = vst [vmem:[%s256 + $0x24] sm:$0xf] %v1424
        %1489 = vst [vmem:[%s256 + $0x28] sm:$0xf] %v1425
        %1490 = vst [vmem:[%s256 + $0x2c] sm:$0xf] %v1426
        %1491 = vst [vmem:[%s256 + $0x30] sm:$0xf] %v1427
        %1492 = vst [vmem:[%s256 + $0x34] sm:$0xf] %v1428
        %1493 = vst [vmem:[%s256 + $0x38] sm:$0xf] %v1429
        %1494 = vst [vmem:[%s256 + $0x3c] sm:$0xf] %v1430
        %1495 = vst [vmem:[%s256 + $0x40] sm:$0xf] %v1431
        %1496 = vst [vmem:[%s256 + $0x44] sm:$0xf] %v1432
        %1497 = vst [vmem:[%s256 + $0x48] sm:$0xf] %v1433
        %1498 = vst [vmem:[%s256 + $0x4c] sm:$0xf] %v1434
        %1499 = vst [vmem:[%s256 + $0x50] sm:$0xf] %v1435
        %1500 = vst [vmem:[%s256 + $0x54] sm:$0xf] %v1436
        %1501 = vst [vmem:[%s256 + $0x58] sm:$0xf] %v1437
        %1502 = vst [vmem:[%s256 + $0x5c] sm:$0xf] %v1438
        %1503 = vst [vmem:[%s256 + $0x60] sm:$0xf] %v1439
        %1504 = vst [vmem:[%s256 + $0x64] sm:$0xf] %v1440
        %1505 = vst [vmem:[%s256 + $0x68] sm:$0xf] %v1441
        %1506 = vst [vmem:[%s256 + $0x6c] sm:$0xf] %v1442
        %1507 = vst [vmem:[%s256 + $0x70] sm:$0xf] %v1443
        %1508 = vst [vmem:[%s256 + $0x74] sm:$0xf] %v1444
        %1509 = vst [vmem:[%s256 + $0x78] sm:$0xf] %v1445
        %1510 = vst [vmem:[%s256 + $0x7c] sm:$0xf] %v1446
        %v1527 = vunpack.c.l.b16 %v1273
        %v1528 = vunpack.c.h.b16 %v1273
        %v1529 = vunpack.c.l.b16 %v1279
        %v1530 = vunpack.c.h.b16 %v1279
        %v1531 = vunpack.c.l.b16 %v1285
        %v1532 = vunpack.c.h.b16 %v1285
        %v1533 = vunpack.c.l.b16 %v1291
        %v1534 = vunpack.c.h.b16 %v1291
        %v1535 = vunpack.c.l.b16 %v1297
        %v1536 = vunpack.c.h.b16 %v1297
        %v1537 = vunpack.c.l.b16 %v1303
        %v1538 = vunpack.c.h.b16 %v1303
        %v1539 = vunpack.c.l.b16 %v1309
        %v1540 = vunpack.c.h.b16 %v1309
        %v1541 = vunpack.c.l.b16 %v1315
        %v1542 = vunpack.c.h.b16 %v1315
        %v1543 = vunpack.c.l.b16 %v1321
        %v1544 = vunpack.c.h.b16 %v1321
        %v1545 = vunpack.c.l.b16 %v1327
        %v1546 = vunpack.c.h.b16 %v1327
        %v1547 = vunpack.c.l.b16 %v1333
        %v1548 = vunpack.c.h.b16 %v1333
        %v1549 = vunpack.c.l.b16 %v1339
        %v1550 = vunpack.c.h.b16 %v1339
        %v1551 = vunpack.c.l.b16 %v1345
        %v1552 = vunpack.c.h.b16 %v1345
        %v1553 = vunpack.c.l.b16 %v1351
        %v1554 = vunpack.c.h.b16 %v1351
        %v1555 = vunpack.c.l.b16 %v1357
        %v1556 = vunpack.c.h.b16 %v1357
        %v1557 = vunpack.c.l.b16 %v1363
        %v1558 = vunpack.c.h.b16 %v1363
        %v1559 = vpack.c.b16 %v1527, %v1527
        %v1560 = vpack.c.b16 %v1528, %v1528
        %v1561 = vpack.c.b16 %v1529, %v1529
        %v1562 = vpack.c.b16 %v1530, %v1530
        %v1563 = vpack.c.b16 %v1531, %v1531
        %v1564 = vpack.c.b16 %v1532, %v1532
        %v1565 = vpack.c.b16 %v1533, %v1533
        %v1566 = vpack.c.b16 %v1534, %v1534
        %v1567 = vpack.c.b16 %v1535, %v1535
        %v1568 = vpack.c.b16 %v1536, %v1536
        %v1569 = vpack.c.b16 %v1537, %v1537
        %v1570 = vpack.c.b16 %v1538, %v1538
        %v1571 = vpack.c.b16 %v1539, %v1539
        %v1572 = vpack.c.b16 %v1540, %v1540
        %v1573 = vpack.c.b16 %v1541, %v1541
        %v1574 = vpack.c.b16 %v1542, %v1542
        %v1575 = vpack.c.b16 %v1543, %v1543
        %v1576 = vpack.c.b16 %v1544, %v1544
        %v1577 = vpack.c.b16 %v1545, %v1545
        %v1578 = vpack.c.b16 %v1546, %v1546
        %v1579 = vpack.c.b16 %v1547, %v1547
        %v1580 = vpack.c.b16 %v1548, %v1548
        %v1581 = vpack.c.b16 %v1549, %v1549
        %v1582 = vpack.c.b16 %v1550, %v1550
        %v1583 = vpack.c.b16 %v1551, %v1551
        %v1584 = vpack.c.b16 %v1552, %v1552
        %v1585 = vpack.c.b16 %v1553, %v1553
        %v1586 = vpack.c.b16 %v1554, %v1554
        %v1587 = vpack.c.b16 %v1555, %v1555
        %v1588 = vpack.c.b16 %v1556, %v1556
        %v1589 = vpack.c.b16 %v1557, %v1557
        %v1590 = vpack.c.b16 %v1558, %v1558
        %1623 = vst [vmem:[%s263] sm:$0xf] %v1559
        %1624 = vst [vmem:[%s263 + $0x4] sm:$0xf] %v1560
        %1625 = vst [vmem:[%s263 + $0x8] sm:$0xf] %v1561
        %1626 = vst [vmem:[%s263 + $0xc] sm:$0xf] %v1562
        %1627 = vst [vmem:[%s263 + $0x10] sm:$0xf] %v1563
        %1628 = vst [vmem:[%s263 + $0x14] sm:$0xf] %v1564
        %1629 = vst [vmem:[%s263 + $0x18] sm:$0xf] %v1565
        %1630 = vst [vmem:[%s263 + $0x1c] sm:$0xf] %v1566
        %1631 = vst [vmem:[%s263 + $0x20] sm:$0xf] %v1567
        %1632 = vst [vmem:[%s263 + $0x24] sm:$0xf] %v1568
        %1633 = vst [vmem:[%s263 + $0x28] sm:$0xf] %v1569
        %1634 = vst [vmem:[%s263 + $0x2c] sm:$0xf] %v1570
        %1635 = vst [vmem:[%s263 + $0x30] sm:$0xf] %v1571
        %1636 = vst [vmem:[%s263 + $0x34] sm:$0xf] %v1572
        %1637 = vst [vmem:[%s263 + $0x38] sm:$0xf] %v1573
        %1638 = vst [vmem:[%s263 + $0x3c] sm:$0xf] %v1574
        %1639 = vst [vmem:[%s263 + $0x40] sm:$0xf] %v1575
        %1640 = vst [vmem:[%s263 + $0x44] sm:$0xf] %v1576
        %1641 = vst [vmem:[%s263 + $0x48] sm:$0xf] %v1577
        %1642 = vst [vmem:[%s263 + $0x4c] sm:$0xf] %v1578
        %1643 = vst [vmem:[%s263 + $0x50] sm:$0xf] %v1579
        %1644 = vst [vmem:[%s263 + $0x54] sm:$0xf] %v1580
        %1645 = vst [vmem:[%s263 + $0x58] sm:$0xf] %v1581
        %1646 = vst [vmem:[%s263 + $0x5c] sm:$0xf] %v1582
        %1647 = vst [vmem:[%s263 + $0x60] sm:$0xf] %v1583
        %1648 = vst [vmem:[%s263 + $0x64] sm:$0xf] %v1584
        %1649 = vst [vmem:[%s263 + $0x68] sm:$0xf] %v1585
        %1650 = vst [vmem:[%s263 + $0x6c] sm:$0xf] %v1586
        %1651 = vst [vmem:[%s263 + $0x70] sm:$0xf] %v1587
        %1652 = vst [vmem:[%s263 + $0x74] sm:$0xf] %v1588
        %1653 = vst [vmem:[%s263 + $0x78] sm:$0xf] %v1589
        %1654 = vst [vmem:[%s263 + $0x7c] sm:$0xf] %v1590
        %v1671 = vunpack.c.l.b16 %v1275
        %v1672 = vunpack.c.h.b16 %v1275
        %v1673 = vunpack.c.l.b16 %v1281
        %v1674 = vunpack.c.h.b16 %v1281
        %v1675 = vunpack.c.l.b16 %v1287
        %v1676 = vunpack.c.h.b16 %v1287
        %v1677 = vunpack.c.l.b16 %v1293
        %v1678 = vunpack.c.h.b16 %v1293
        %v1679 = vunpack.c.l.b16 %v1299
        %v1680 = vunpack.c.h.b16 %v1299
        %v1681 = vunpack.c.l.b16 %v1305
        %v1682 = vunpack.c.h.b16 %v1305
        %v1683 = vunpack.c.l.b16 %v1311
        %v1684 = vunpack.c.h.b16 %v1311
        %v1685 = vunpack.c.l.b16 %v1317
        %v1686 = vunpack.c.h.b16 %v1317
        %v1687 = vunpack.c.l.b16 %v1323
        %v1688 = vunpack.c.h.b16 %v1323
        %v1689 = vunpack.c.l.b16 %v1329
        %v1690 = vunpack.c.h.b16 %v1329
        %v1691 = vunpack.c.l.b16 %v1335
        %v1692 = vunpack.c.h.b16 %v1335
        %v1693 = vunpack.c.l.b16 %v1341
        %v1694 = vunpack.c.h.b16 %v1341
        %v1695 = vunpack.c.l.b16 %v1347
        %v1696 = vunpack.c.h.b16 %v1347
        %v1697 = vunpack.c.l.b16 %v1353
        %v1698 = vunpack.c.h.b16 %v1353
        %v1699 = vunpack.c.l.b16 %v1359
        %v1700 = vunpack.c.h.b16 %v1359
        %v1701 = vunpack.c.l.b16 %v1365
        %v1702 = vunpack.c.h.b16 %v1365
        %v1703 = vpack.c.b16 %v1671, %v1671
        %v1704 = vpack.c.b16 %v1672, %v1672
        %v1705 = vpack.c.b16 %v1673, %v1673
        %v1706 = vpack.c.b16 %v1674, %v1674
        %v1707 = vpack.c.b16 %v1675, %v1675
        %v1708 = vpack.c.b16 %v1676, %v1676
        %v1709 = vpack.c.b16 %v1677, %v1677
        %v1710 = vpack.c.b16 %v1678, %v1678
        %v1711 = vpack.c.b16 %v1679, %v1679
        %v1712 = vpack.c.b16 %v1680, %v1680
        %v1713 = vpack.c.b16 %v1681, %v1681
        %v1714 = vpack.c.b16 %v1682, %v1682
        %v1715 = vpack.c.b16 %v1683, %v1683
        %v1716 = vpack.c.b16 %v1684, %v1684
        %v1717 = vpack.c.b16 %v1685, %v1685
        %v1718 = vpack.c.b16 %v1686, %v1686
        %v1719 = vpack.c.b16 %v1687, %v1687
        %v1720 = vpack.c.b16 %v1688, %v1688
        %v1721 = vpack.c.b16 %v1689, %v1689
        %v1722 = vpack.c.b16 %v1690, %v1690
        %v1723 = vpack.c.b16 %v1691, %v1691
        %v1724 = vpack.c.b16 %v1692, %v1692
        %v1725 = vpack.c.b16 %v1693, %v1693
        %v1726 = vpack.c.b16 %v1694, %v1694
        %v1727 = vpack.c.b16 %v1695, %v1695
        %v1728 = vpack.c.b16 %v1696, %v1696
        %v1729 = vpack.c.b16 %v1697, %v1697
        %v1730 = vpack.c.b16 %v1698, %v1698
        %v1731 = vpack.c.b16 %v1699, %v1699
        %v1732 = vpack.c.b16 %v1700, %v1700
        %v1733 = vpack.c.b16 %v1701, %v1701
        %v1734 = vpack.c.b16 %v1702, %v1702
        %1767 = vst [vmem:[%s270] sm:$0xf] %v1703
        %1768 = vst [vmem:[%s270 + $0x4] sm:$0xf] %v1704
        %1769 = vst [vmem:[%s270 + $0x8] sm:$0xf] %v1705
        %1770 = vst [vmem:[%s270 + $0xc] sm:$0xf] %v1706
        %1771 = vst [vmem:[%s270 + $0x10] sm:$0xf] %v1707
        %1772 = vst [vmem:[%s270 + $0x14] sm:$0xf] %v1708
        %1773 = vst [vmem:[%s270 + $0x18] sm:$0xf] %v1709
        %1774 = vst [vmem:[%s270 + $0x1c] sm:$0xf] %v1710
        %1775 = vst [vmem:[%s270 + $0x20] sm:$0xf] %v1711
        %1776 = vst [vmem:[%s270 + $0x24] sm:$0xf] %v1712
        %1777 = vst [vmem:[%s270 + $0x28] sm:$0xf] %v1713
        %1778 = vst [vmem:[%s270 + $0x2c] sm:$0xf] %v1714
        %1779 = vst [vmem:[%s270 + $0x30] sm:$0xf] %v1715
        %1780 = vst [vmem:[%s270 + $0x34] sm:$0xf] %v1716
        %1781 = vst [vmem:[%s270 + $0x38] sm:$0xf] %v1717
        %1782 = vst [vmem:[%s270 + $0x3c] sm:$0xf] %v1718
        %1783 = vst [vmem:[%s270 + $0x40] sm:$0xf] %v1719
        %1784 = vst [vmem:[%s270 + $0x44] sm:$0xf] %v1720
        %1785 = vst [vmem:[%s270 + $0x48] sm:$0xf] %v1721
        %1786 = vst [vmem:[%s270 + $0x4c] sm:$0xf] %v1722
        %1787 = vst [vmem:[%s270 + $0x50] sm:$0xf] %v1723
        %1788 = vst [vmem:[%s270 + $0x54] sm:$0xf] %v1724
        %1789 = vst [vmem:[%s270 + $0x58] sm:$0xf] %v1725
        %1790 = vst [vmem:[%s270 + $0x5c] sm:$0xf] %v1726
        %1791 = vst [vmem:[%s270 + $0x60] sm:$0xf] %v1727
        %1792 = vst [vmem:[%s270 + $0x64] sm:$0xf] %v1728
        %1793 = vst [vmem:[%s270 + $0x68] sm:$0xf] %v1729
        %1794 = vst [vmem:[%s270 + $0x6c] sm:$0xf] %v1730
        %1795 = vst [vmem:[%s270 + $0x70] sm:$0xf] %v1731
        %1796 = vst [vmem:[%s270 + $0x74] sm:$0xf] %v1732
        %1797 = vst [vmem:[%s270 + $0x78] sm:$0xf] %v1733
        %1798 = vst [vmem:[%s270 + $0x7c] sm:$0xf] %v1734
        %v1815 = vunpack.c.l.b16 %v1272
        %v1816 = vunpack.c.h.b16 %v1272
        %v1817 = vunpack.c.l.b16 %v1278
        %v1818 = vunpack.c.h.b16 %v1278
        %v1819 = vunpack.c.l.b16 %v1284
        %v1820 = vunpack.c.h.b16 %v1284
        %v1821 = vunpack.c.l.b16 %v1290
        %v1822 = vunpack.c.h.b16 %v1290
        %v1823 = vunpack.c.l.b16 %v1296
        %v1824 = vunpack.c.h.b16 %v1296
        %v1825 = vunpack.c.l.b16 %v1302
        %v1826 = vunpack.c.h.b16 %v1302
        %v1827 = vunpack.c.l.b16 %v1308
        %v1828 = vunpack.c.h.b16 %v1308
        %v1829 = vunpack.c.l.b16 %v1314
        %v1830 = vunpack.c.h.b16 %v1314
        %v1831 = vunpack.c.l.b16 %v1320
        %v1832 = vunpack.c.h.b16 %v1320
        %v1833 = vunpack.c.l.b16 %v1326
        %v1834 = vunpack.c.h.b16 %v1326
        %v1835 = vunpack.c.l.b16 %v1332
        %v1836 = vunpack.c.h.b16 %v1332
        %v1837 = vunpack.c.l.b16 %v1338
        %v1838 = vunpack.c.h.b16 %v1338
        %v1839 = vunpack.c.l.b16 %v1344
        %v1840 = vunpack.c.h.b16 %v1344
        %v1841 = vunpack.c.l.b16 %v1350
        %v1842 = vunpack.c.h.b16 %v1350
        %v1843 = vunpack.c.l.b16 %v1356
        %v1844 = vunpack.c.h.b16 %v1356
        %v1845 = vunpack.c.l.b16 %v1362
        %v1846 = vunpack.c.h.b16 %v1362
        %v1847 = vpack.c.b16 %v1815, %v1815
        %v1848 = vpack.c.b16 %v1816, %v1816
        %v1849 = vpack.c.b16 %v1817, %v1817
        %v1850 = vpack.c.b16 %v1818, %v1818
        %v1851 = vpack.c.b16 %v1819, %v1819
        %v1852 = vpack.c.b16 %v1820, %v1820
        %v1853 = vpack.c.b16 %v1821, %v1821
        %v1854 = vpack.c.b16 %v1822, %v1822
        %v1855 = vpack.c.b16 %v1823, %v1823
        %v1856 = vpack.c.b16 %v1824, %v1824
        %v1857 = vpack.c.b16 %v1825, %v1825
        %v1858 = vpack.c.b16 %v1826, %v1826
        %v1859 = vpack.c.b16 %v1827, %v1827
        %v1860 = vpack.c.b16 %v1828, %v1828
        %v1861 = vpack.c.b16 %v1829, %v1829
        %v1862 = vpack.c.b16 %v1830, %v1830
        %v1863 = vpack.c.b16 %v1831, %v1831
        %v1864 = vpack.c.b16 %v1832, %v1832
        %v1865 = vpack.c.b16 %v1833, %v1833
        %v1866 = vpack.c.b16 %v1834, %v1834
        %v1867 = vpack.c.b16 %v1835, %v1835
        %v1868 = vpack.c.b16 %v1836, %v1836
        %v1869 = vpack.c.b16 %v1837, %v1837
        %v1870 = vpack.c.b16 %v1838, %v1838
        %v1871 = vpack.c.b16 %v1839, %v1839
        %v1872 = vpack.c.b16 %v1840, %v1840
        %v1873 = vpack.c.b16 %v1841, %v1841
        %v1874 = vpack.c.b16 %v1842, %v1842
        %v1875 = vpack.c.b16 %v1843, %v1843
        %v1876 = vpack.c.b16 %v1844, %v1844
        %v1877 = vpack.c.b16 %v1845, %v1845
        %v1878 = vpack.c.b16 %v1846, %v1846
        %s1911 = scalar_lea.vmem %s256, 128 [#allocation7]
        %1912 = vst [vmem:[%s1911] sm:$0xf] %v1847
        %1913 = vst [vmem:[%s1911 + $0x4] sm:$0xf] %v1848
        %1914 = vst [vmem:[%s1911 + $0x8] sm:$0xf] %v1849
        %1915 = vst [vmem:[%s1911 + $0xc] sm:$0xf] %v1850
        %1916 = vst [vmem:[%s1911 + $0x10] sm:$0xf] %v1851
        %1917 = vst [vmem:[%s1911 + $0x14] sm:$0xf] %v1852
        %1918 = vst [vmem:[%s1911 + $0x18] sm:$0xf] %v1853
        %1919 = vst [vmem:[%s1911 + $0x1c] sm:$0xf] %v1854
        %1920 = vst [vmem:[%s1911 + $0x20] sm:$0xf] %v1855
        %1921 = vst [vmem:[%s1911 + $0x24] sm:$0xf] %v1856
        %1922 = vst [vmem:[%s1911 + $0x28] sm:$0xf] %v1857
        %1923 = vst [vmem:[%s1911 + $0x2c] sm:$0xf] %v1858
        %1924 = vst [vmem:[%s1911 + $0x30] sm:$0xf] %v1859
        %1925 = vst [vmem:[%s1911 + $0x34] sm:$0xf] %v1860
        %1926 = vst [vmem:[%s1911 + $0x38] sm:$0xf] %v1861
        %1927 = vst [vmem:[%s1911 + $0x3c] sm:$0xf] %v1862
        %1928 = vst [vmem:[%s1911 + $0x40] sm:$0xf] %v1863
        %1929 = vst [vmem:[%s1911 + $0x44] sm:$0xf] %v1864
        %1930 = vst [vmem:[%s1911 + $0x48] sm:$0xf] %v1865
        %1931 = vst [vmem:[%s1911 + $0x4c] sm:$0xf] %v1866
        %1932 = vst [vmem:[%s1911 + $0x50] sm:$0xf] %v1867
        %1933 = vst [vmem:[%s1911 + $0x54] sm:$0xf] %v1868
        %1934 = vst [vmem:[%s1911 + $0x58] sm:$0xf] %v1869
        %1935 = vst [vmem:[%s1911 + $0x5c] sm:$0xf] %v1870
        %1936 = vst [vmem:[%s1911 + $0x60] sm:$0xf] %v1871
        %1937 = vst [vmem:[%s1911 + $0x64] sm:$0xf] %v1872
        %1938 = vst [vmem:[%s1911 + $0x68] sm:$0xf] %v1873
        %1939 = vst [vmem:[%s1911 + $0x6c] sm:$0xf] %v1874
        %1940 = vst [vmem:[%s1911 + $0x70] sm:$0xf] %v1875
        %1941 = vst [vmem:[%s1911 + $0x74] sm:$0xf] %v1876
        %1942 = vst [vmem:[%s1911 + $0x78] sm:$0xf] %v1877
        %1943 = vst [vmem:[%s1911 + $0x7c] sm:$0xf] %v1878
        %v1960 = vunpack.c.l.b16 %v1274
        %v1961 = vunpack.c.h.b16 %v1274
        %v1962 = vunpack.c.l.b16 %v1280
        %v1963 = vunpack.c.h.b16 %v1280
        %v1964 = vunpack.c.l.b16 %v1286
        %v1965 = vunpack.c.h.b16 %v1286
        %v1966 = vunpack.c.l.b16 %v1292
        %v1967 = vunpack.c.h.b16 %v1292
        %v1968 = vunpack.c.l.b16 %v1298
        %v1969 = vunpack.c.h.b16 %v1298
        %v1970 = vunpack.c.l.b16 %v1304
        %v1971 = vunpack.c.h.b16 %v1304
        %v1972 = vunpack.c.l.b16 %v1310
        %v1973 = vunpack.c.h.b16 %v1310
        %v1974 = vunpack.c.l.b16 %v1316
        %v1975 = vunpack.c.h.b16 %v1316
        %v1976 = vunpack.c.l.b16 %v1322
        %v1977 = vunpack.c.h.b16 %v1322
        %v1978 = vunpack.c.l.b16 %v1328
        %v1979 = vunpack.c.h.b16 %v1328
        %v1980 = vunpack.c.l.b16 %v1334
        %v1981 = vunpack.c.h.b16 %v1334
        %v1982 = vunpack.c.l.b16 %v1340
        %v1983 = vunpack.c.h.b16 %v1340
        %v1984 = vunpack.c.l.b16 %v1346
        %v1985 = vunpack.c.h.b16 %v1346
        %v1986 = vunpack.c.l.b16 %v1352
        %v1987 = vunpack.c.h.b16 %v1352
        %v1988 = vunpack.c.l.b16 %v1358
        %v1989 = vunpack.c.h.b16 %v1358
        %v1990 = vunpack.c.l.b16 %v1364
        %v1991 = vunpack.c.h.b16 %v1364
        %v1992 = vpack.c.b16 %v1960, %v1960
        %v1993 = vpack.c.b16 %v1961, %v1961
        %v1994 = vpack.c.b16 %v1962, %v1962
        %v1995 = vpack.c.b16 %v1963, %v1963
        %v1996 = vpack.c.b16 %v1964, %v1964
        %v1997 = vpack.c.b16 %v1965, %v1965
        %v1998 = vpack.c.b16 %v1966, %v1966
        %v1999 = vpack.c.b16 %v1967, %v1967
        %v2000 = vpack.c.b16 %v1968, %v1968
        %v2001 = vpack.c.b16 %v1969, %v1969
        %v2002 = vpack.c.b16 %v1970, %v1970
        %v2003 = vpack.c.b16 %v1971, %v1971
        %v2004 = vpack.c.b16 %v1972, %v1972
        %v2005 = vpack.c.b16 %v1973, %v1973
        %v2006 = vpack.c.b16 %v1974, %v1974
        %v2007 = vpack.c.b16 %v1975, %v1975
        %v2008 = vpack.c.b16 %v1976, %v1976
        %v2009 = vpack.c.b16 %v1977, %v1977
        %v2010 = vpack.c.b16 %v1978, %v1978
        %v2011 = vpack.c.b16 %v1979, %v1979
        %v2012 = vpack.c.b16 %v1980, %v1980
        %v2013 = vpack.c.b16 %v1981, %v1981
        %v2014 = vpack.c.b16 %v1982, %v1982
        %v2015 = vpack.c.b16 %v1983, %v1983
        %v2016 = vpack.c.b16 %v1984, %v1984
        %v2017 = vpack.c.b16 %v1985, %v1985
        %v2018 = vpack.c.b16 %v1986, %v1986
        %v2019 = vpack.c.b16 %v1987, %v1987
        %v2020 = vpack.c.b16 %v1988, %v1988
        %v2021 = vpack.c.b16 %v1989, %v1989
        %v2022 = vpack.c.b16 %v1990, %v1990
        %v2023 = vpack.c.b16 %v1991, %v1991
        %s2056 = scalar_lea.vmem %s263, 128 [#allocation8]
        %2057 = vst [vmem:[%s2056] sm:$0xf] %v1992
        %2058 = vst [vmem:[%s2056 + $0x4] sm:$0xf] %v1993
        %2059 = vst [vmem:[%s2056 + $0x8] sm:$0xf] %v1994
        %2060 = vst [vmem:[%s2056 + $0xc] sm:$0xf] %v1995
        %2061 = vst [vmem:[%s2056 + $0x10] sm:$0xf] %v1996
        %2062 = vst [vmem:[%s2056 + $0x14] sm:$0xf] %v1997
        %2063 = vst [vmem:[%s2056 + $0x18] sm:$0xf] %v1998
        %2064 = vst [vmem:[%s2056 + $0x1c] sm:$0xf] %v1999
        %2065 = vst [vmem:[%s2056 + $0x20] sm:$0xf] %v2000
        %2066 = vst [vmem:[%s2056 + $0x24] sm:$0xf] %v2001
        %2067 = vst [vmem:[%s2056 + $0x28] sm:$0xf] %v2002
        %2068 = vst [vmem:[%s2056 + $0x2c] sm:$0xf] %v2003
        %2069 = vst [vmem:[%s2056 + $0x30] sm:$0xf] %v2004
        %2070 = vst [vmem:[%s2056 + $0x34] sm:$0xf] %v2005
        %2071 = vst [vmem:[%s2056 + $0x38] sm:$0xf] %v2006
        %2072 = vst [vmem:[%s2056 + $0x3c] sm:$0xf] %v2007
        %2073 = vst [vmem:[%s2056 + $0x40] sm:$0xf] %v2008
        %2074 = vst [vmem:[%s2056 + $0x44] sm:$0xf] %v2009
        %2075 = vst [vmem:[%s2056 + $0x48] sm:$0xf] %v2010
        %2076 = vst [vmem:[%s2056 + $0x4c] sm:$0xf] %v2011
        %2077 = vst [vmem:[%s2056 + $0x50] sm:$0xf] %v2012
        %2078 = vst [vmem:[%s2056 + $0x54] sm:$0xf] %v2013
        %2079 = vst [vmem:[%s2056 + $0x58] sm:$0xf] %v2014
        %2080 = vst [vmem:[%s2056 + $0x5c] sm:$0xf] %v2015
        %2081 = vst [vmem:[%s2056 + $0x60] sm:$0xf] %v2016
        %2082 = vst [vmem:[%s2056 + $0x64] sm:$0xf] %v2017
        %2083 = vst [vmem:[%s2056 + $0x68] sm:$0xf] %v2018
        %2084 = vst [vmem:[%s2056 + $0x6c] sm:$0xf] %v2019
        %2085 = vst [vmem:[%s2056 + $0x70] sm:$0xf] %v2020
        %2086 = vst [vmem:[%s2056 + $0x74] sm:$0xf] %v2021
        %2087 = vst [vmem:[%s2056 + $0x78] sm:$0xf] %v2022
        %2088 = vst [vmem:[%s2056 + $0x7c] sm:$0xf] %v2023
        %v2105 = vunpack.c.l.b16 %v1276
        %v2106 = vunpack.c.h.b16 %v1276
        %v2107 = vunpack.c.l.b16 %v1282
        %v2108 = vunpack.c.h.b16 %v1282
        %v2109 = vunpack.c.l.b16 %v1288
        %v2110 = vunpack.c.h.b16 %v1288
        %v2111 = vunpack.c.l.b16 %v1294
        %v2112 = vunpack.c.h.b16 %v1294
        %v2113 = vunpack.c.l.b16 %v1300
        %v2114 = vunpack.c.h.b16 %v1300
        %v2115 = vunpack.c.l.b16 %v1306
        %v2116 = vunpack.c.h.b16 %v1306
        %v2117 = vunpack.c.l.b16 %v1312
        %v2118 = vunpack.c.h.b16 %v1312
        %v2119 = vunpack.c.l.b16 %v1318
        %v2120 = vunpack.c.h.b16 %v1318
        %v2121 = vunpack.c.l.b16 %v1324
        %v2122 = vunpack.c.h.b16 %v1324
        %v2123 = vunpack.c.l.b16 %v1330
        %v2124 = vunpack.c.h.b16 %v1330
        %v2125 = vunpack.c.l.b16 %v1336
        %v2126 = vunpack.c.h.b16 %v1336
        %v2127 = vunpack.c.l.b16 %v1342
        %v2128 = vunpack.c.h.b16 %v1342
        %v2129 = vunpack.c.l.b16 %v1348
        %v2130 = vunpack.c.h.b16 %v1348
        %v2131 = vunpack.c.l.b16 %v1354
        %v2132 = vunpack.c.h.b16 %v1354
        %v2133 = vunpack.c.l.b16 %v1360
        %v2134 = vunpack.c.h.b16 %v1360
        %v2135 = vunpack.c.l.b16 %v1366
        %v2136 = vunpack.c.h.b16 %v1366
        %v2137 = vpack.c.b16 %v2105, %v2105
        %v2138 = vpack.c.b16 %v2106, %v2106
        %v2139 = vpack.c.b16 %v2107, %v2107
        %v2140 = vpack.c.b16 %v2108, %v2108
        %v2141 = vpack.c.b16 %v2109, %v2109
        %v2142 = vpack.c.b16 %v2110, %v2110
        %v2143 = vpack.c.b16 %v2111, %v2111
        %v2144 = vpack.c.b16 %v2112, %v2112
        %v2145 = vpack.c.b16 %v2113, %v2113
        %v2146 = vpack.c.b16 %v2114, %v2114
        %v2147 = vpack.c.b16 %v2115, %v2115
        %v2148 = vpack.c.b16 %v2116, %v2116
        %v2149 = vpack.c.b16 %v2117, %v2117
        %v2150 = vpack.c.b16 %v2118, %v2118
        %v2151 = vpack.c.b16 %v2119, %v2119
        %v2152 = vpack.c.b16 %v2120, %v2120
        %v2153 = vpack.c.b16 %v2121, %v2121
        %v2154 = vpack.c.b16 %v2122, %v2122
        %v2155 = vpack.c.b16 %v2123, %v2123
        %v2156 = vpack.c.b16 %v2124, %v2124
        %v2157 = vpack.c.b16 %v2125, %v2125
        %v2158 = vpack.c.b16 %v2126, %v2126
        %v2159 = vpack.c.b16 %v2127, %v2127
        %v2160 = vpack.c.b16 %v2128, %v2128
        %v2161 = vpack.c.b16 %v2129, %v2129
        %v2162 = vpack.c.b16 %v2130, %v2130
        %v2163 = vpack.c.b16 %v2131, %v2131
        %v2164 = vpack.c.b16 %v2132, %v2132
        %v2165 = vpack.c.b16 %v2133, %v2133
        %v2166 = vpack.c.b16 %v2134, %v2134
        %v2167 = vpack.c.b16 %v2135, %v2135
        %v2168 = vpack.c.b16 %v2136, %v2136
        %s2201 = scalar_lea.vmem %s270, 128 [#allocation10]
        %2202 = vst [vmem:[%s2201] sm:$0xf] %v2137
        %2203 = vst [vmem:[%s2201 + $0x4] sm:$0xf] %v2138
        %2204 = vst [vmem:[%s2201 + $0x8] sm:$0xf] %v2139
        %2205 = vst [vmem:[%s2201 + $0xc] sm:$0xf] %v2140
        %2206 = vst [vmem:[%s2201 + $0x10] sm:$0xf] %v2141
        %2207 = vst [vmem:[%s2201 + $0x14] sm:$0xf] %v2142
        %2208 = vst [vmem:[%s2201 + $0x18] sm:$0xf] %v2143
        %2209 = vst [vmem:[%s2201 + $0x1c] sm:$0xf] %v2144
        %2210 = vst [vmem:[%s2201 + $0x20] sm:$0xf] %v2145
        %2211 = vst [vmem:[%s2201 + $0x24] sm:$0xf] %v2146
        %2212 = vst [vmem:[%s2201 + $0x28] sm:$0xf] %v2147
        %2213 = vst [vmem:[%s2201 + $0x2c] sm:$0xf] %v2148
        %2214 = vst [vmem:[%s2201 + $0x30] sm:$0xf] %v2149
        %2215 = vst [vmem:[%s2201 + $0x34] sm:$0xf] %v2150
        %2216 = vst [vmem:[%s2201 + $0x38] sm:$0xf] %v2151
        %2217 = vst [vmem:[%s2201 + $0x3c] sm:$0xf] %v2152
        %2218 = vst [vmem:[%s2201 + $0x40] sm:$0xf] %v2153
        %2219 = vst [vmem:[%s2201 + $0x44] sm:$0xf] %v2154
        %2220 = vst [vmem:[%s2201 + $0x48] sm:$0xf] %v2155
        %2221 = vst [vmem:[%s2201 + $0x4c] sm:$0xf] %v2156
        %2222 = vst [vmem:[%s2201 + $0x50] sm:$0xf] %v2157
        %2223 = vst [vmem:[%s2201 + $0x54] sm:$0xf] %v2158
        %2224 = vst [vmem:[%s2201 + $0x58] sm:$0xf] %v2159
        %2225 = vst [vmem:[%s2201 + $0x5c] sm:$0xf] %v2160
        %2226 = vst [vmem:[%s2201 + $0x60] sm:$0xf] %v2161
        %2227 = vst [vmem:[%s2201 + $0x64] sm:$0xf] %v2162
        %2228 = vst [vmem:[%s2201 + $0x68] sm:$0xf] %v2163
        %2229 = vst [vmem:[%s2201 + $0x6c] sm:$0xf] %v2164
        %2230 = vst [vmem:[%s2201 + $0x70] sm:$0xf] %v2165
        %2231 = vst [vmem:[%s2201 + $0x74] sm:$0xf] %v2166
        %2232 = vst [vmem:[%s2201 + $0x78] sm:$0xf] %v2167
        %2233 = vst [vmem:[%s2201 + $0x7c] sm:$0xf] %v2168
        %s2234 = sand.u32 %s97, 1
        %s2235 = scalar_lea.sflag [#allocation4], %s2234
        %s2236 = sand.u32 %s97, 1
        %s2237 = smul.addr %s2236, 256
        %s2238 = scalar_lea.vmem [#allocation7], %s2237
        %s2239 = sand.u32 %s26, 1
        %s2240 = scalar_lea.sflag [#allocation9], %s2239
        %s2241 = sand.u32 %s125, 1
        %s2242 = smul.addr %s2241, 256
        %s2243 = scalar_lea.vmem [#allocation8], %s2242
        %s2244 = sand.u32 %s26, 1
        %s2245 = scalar_lea.sflag [#allocation9], %s2244
        %s2246 = sand.u32 %s153, 1
        %s2247 = smul.addr %s2246, 256
        %s2248 = scalar_lea.vmem [#allocation10], %s2247
        // Predicated region
        $region37: #{tpu_custom_call.1} parent=27 // pred_check
          %p2249 = pneg %p107
        $region38: #{tpu_custom_call.1} parent=27 // pred_check_branch
          %2251 = sbr.rel (%p2249) target = $region40
        $region39: #{tpu_custom_call.1} parent=27 // pred_region
          #allocation12 [shape = 'u32[6]{0}', space=smem, size = 0x18, scoped, tag = 'DMA stride descriptor']
          %s2252 = smul.u32 32, %s31
          %s2254 = ssub.s32 4096, 4096
          %2255 = vsyncadd %s2235, %s2254
          %s2256 = smul.addr %s30, 128
          %s2257 = sadd.s32 %s2252, %s2256
          %s2258 = smul.addr %s2257, 64
          %s2259 = scalar_lea.hbm %s2, %s2258
          %s2261 = sshll.u32 1, 14
          %s2262 = sxor.u32 4294967295, %s2261
          %s2265 = sshll.u32 7, 18
          %s2266 = sxor.u32 4294967295, %s2265
          %s2267 = sand.u32 0, %s2266
          %s2269 = sor.u32 %s2267, 0
          %s2270 = sshll.u32 %s2238, 4
          %s2271 = int_to_ptr.vmem [resolvable:$true] %s2270
          %2277 = sst [smem:[#allocation12]] 2048
          %s2278 = scalar_lea.smem [#allocation12], 1
          %2279 = sst [smem:[%s2278]] 4096
          %s2280 = scalar_lea.smem [#allocation12], 2
          %2281 = sst [smem:[%s2280]] 32
          %s2282 = scalar_lea.smem [#allocation12], 3
          %2283 = sst [smem:[%s2282]] 64
          %s2284 = scalar_lea.smem [#allocation12], 4
          %2285 = sst [smem:[%s2284]] 64
          %s2286 = scalar_lea.smem [#allocation12], 5
          %2287 = sst [smem:[%s2286]] 4
          %2289 = dma.general %s2271, 4096, %s2259, %s2235, 131072, [#allocation12], %s2269, 0
        $region40: #{tpu_custom_call.1} parent=27 // pred_fallthru
          _
        // Predicated region
        $region41: #{tpu_custom_call.1} parent=27 // pred_check
          %p2290 = pneg %p135
        $region42: #{tpu_custom_call.1} parent=27 // pred_check_branch
          %2292 = sbr.rel (%p2290) target = $region44
        $region43: #{tpu_custom_call.1} parent=27 // pred_region
          #allocation14 [shape = 'u32[6]{0}', space=smem, size = 0x18, scoped, tag = 'DMA stride descriptor']
          %s2293 = smul.u32 32, %s31
          %s2295 = ssub.s32 4096, 4096
          %2296 = vsyncadd %s2240, %s2295
          %s2297 = smul.addr %s30, 128
          %s2298 = sadd.s32 %s2293, %s2297
          %s2299 = smul.addr %s2298, 64
          %s2300 = scalar_lea.hbm %s3, %s2299
          %s2302 = sshll.u32 1, 14
          %s2303 = sxor.u32 4294967295, %s2302
          %s2306 = sshll.u32 7, 18
          %s2307 = sxor.u32 4294967295, %s2306
          %s2308 = sand.u32 0, %s2307
          %s2310 = sor.u32 %s2308, 0
          %s2311 = sshll.u32 %s2243, 4
          %s2312 = int_to_ptr.vmem [resolvable:$true] %s2311
          %2318 = sst [smem:[#allocation14]] 2048
          %s2319 = scalar_lea.smem [#allocation14], 1
          %2320 = sst [smem:[%s2319]] 4096
          %s2321 = scalar_lea.smem [#allocation14], 2
          %2322 = sst [smem:[%s2321]] 32
          %s2323 = scalar_lea.smem [#allocation14], 3
          %2324 = sst [smem:[%s2323]] 64
          %s2325 = scalar_lea.smem [#allocation14], 4
          %2326 = sst [smem:[%s2325]] 64
          %s2327 = scalar_lea.smem [#allocation14], 5
          %2328 = sst [smem:[%s2327]] 4
          %2330 = dma.general %s2312, 4096, %s2300, %s2240, 131072, [#allocation14], %s2310, 0
        $region44: #{tpu_custom_call.1} parent=27 // pred_fallthru
          _
        // Predicated region
        $region45: #{tpu_custom_call.1} parent=27 // pred_check
          %p2331 = pneg %p163
        $region46: #{tpu_custom_call.1} parent=27 // pred_check_branch
          %2333 = sbr.rel (%p2331) target = $region48
        $region47: #{tpu_custom_call.1} parent=27 // pred_region
          #allocation16 [shape = 'u32[6]{0}', space=smem, size = 0x18, scoped, tag = 'DMA stride descriptor']
          %s2334 = smul.u32 32, %s31
          %s2336 = ssub.s32 4096, 4096
          %2337 = vsyncadd %s2245, %s2336
          %s2338 = smul.addr %s30, 128
          %s2339 = sadd.s32 %s2334, %s2338
          %s2340 = smul.addr %s2339, 64
          %s2341 = scalar_lea.hbm %s4, %s2340
          %s2343 = sshll.u32 1, 14
          %s2344 = sxor.u32 4294967295, %s2343
          %s2347 = sshll.u32 7, 18
          %s2348 = sxor.u32 4294967295, %s2347
          %s2349 = sand.u32 0, %s2348
          %s2351 = sor.u32 %s2349, 0
          %s2352 = sshll.u32 %s2248, 4
          %s2353 = int_to_ptr.vmem [resolvable:$true] %s2352
          %2359 = sst [smem:[#allocation16]] 2048
          %s2360 = scalar_lea.smem [#allocation16], 1
          %2361 = sst [smem:[%s2360]] 4096
          %s2362 = scalar_lea.smem [#allocation16], 2
          %2363 = sst [smem:[%s2362]] 32
          %s2364 = scalar_lea.smem [#allocation16], 3
          %2365 = sst [smem:[%s2364]] 64
          %s2366 = scalar_lea.smem [#allocation16], 4
          %2367 = sst [smem:[%s2366]] 64
          %s2368 = scalar_lea.smem [#allocation16], 5
          %2369 = sst [smem:[%s2368]] 4
          %2371 = dma.general %s2353, 4096, %s2341, %s2245, 131072, [#allocation16], %s2351, 0
        $region48: #{tpu_custom_call.1} parent=27 // pred_fallthru
          _
      $region28: #{tpu_custom_call.1} parent=5 // pred_fallthru
        _
      %p2372 = scmp.le.s32.totalorder 2, %s21
      // Predicated region
      $region49: #{tpu_custom_call.1} parent=5 // pred_check
        %p2373 = pneg %p2372
      $region50: #{tpu_custom_call.1} parent=5 // pred_check_branch
        %2375 = sbr.rel (%p2373) target = $region52
      $region51: #{tpu_custom_call.1} parent=5 // pred_region
        %s2376 = ssub.s32 %s21, 2
        // Predicated region
        $region53: #{tpu_custom_call.1} parent=51 // pred_check
          %p2377 = pneg %p113
        $region54: #{tpu_custom_call.1} parent=51 // pred_check_branch
          %2379 = sbr.rel (%p2377) target = $region56
        $region55: #{tpu_custom_call.1} parent=51 // pred_region
          %s2380 = sand.u32 %s98, 1
          %s2381 = scalar_lea.sflag [#allocation4], %s2380
          %s2382 = sand.u32 %s98, 1
          %s2383 = smul.addr %s2382, 256
          %s2384 = scalar_lea.vmem [#allocation7], %s2383
          %2385 = dma.done %s2381, 4096
        $region56: #{tpu_custom_call.1} parent=51 // pred_fallthru
          _
        // Predicated region
        $region57: #{tpu_custom_call.1} parent=51 // pred_check
          %p2386 = pneg %p141
        $region58: #{tpu_custom_call.1} parent=51 // pred_check_branch
          %2388 = sbr.rel (%p2386) target = $region60
        $region59: #{tpu_custom_call.1} parent=51 // pred_region
          %s2389 = sand.u32 %s27, 1
          %s2390 = scalar_lea.sflag [#allocation9], %s2389
          %s2391 = sand.u32 %s126, 1
          %s2392 = smul.addr %s2391, 256
          %s2393 = scalar_lea.vmem [#allocation8], %s2392
          %2394 = dma.done %s2390, 4096
        $region60: #{tpu_custom_call.1} parent=51 // pred_fallthru
          _
        // Predicated region
        $region61: #{tpu_custom_call.1} parent=51 // pred_check
          %p2395 = pneg %p169
        $region62: #{tpu_custom_call.1} parent=51 // pred_check_branch
          %2397 = sbr.rel (%p2395) target = $region64
        $region63: #{tpu_custom_call.1} parent=51 // pred_region
          %s2398 = sand.u32 %s27, 1
          %s2399 = scalar_lea.sflag [#allocation9], %s2398
          %s2400 = sand.u32 %s154, 1
          %s2401 = smul.addr %s2400, 256
          %s2402 = scalar_lea.vmem [#allocation10], %s2401
          %2403 = dma.done %s2399, 4096
        $region64: #{tpu_custom_call.1} parent=51 // pred_fallthru
          _
      $region52: #{tpu_custom_call.1} parent=5 // pred_fallthru
        _
    $region6: #{tpu_custom_call.1} parent=1 // loop_footer
      %s25 = sadd.s32 1, %s21
    $region7: #{tpu_custom_call.1} parent=1 // loop_footer_branch
      %20 = sbr.rel target = $region3
    $region8: #{tpu_custom_call.1} parent=1 // loop_exit
      _
    %2404 = vsyncpa [#allocation3], 1
    %s2405 = scalar_lea.sflag [#allocation3], 1
    %2406 = vsyncpa %s2405, 1
    %2407 = vsyncpa [#allocation6], 1
    %2408 = vsyncpa [#allocation4], 1
    %s2409 = scalar_lea.sflag [#allocation4], 1
    %2410 = vsyncpa %s2409, 1
    %2411 = vsyncpa [#allocation9], 1
    %s2412 = scalar_lea.sflag [#allocation9], 1
    %2413 = vsyncpa %s2412, 1

</llo_original>
